<compile_context>
chip_gen: v7x
topology: tpu7x:2x2x1
jax: 0.10.0
libtpu: 0.0.40
codegen_flags: <defaults>
</compile_context>

<pallas_src>
import functools
import math

import jax
import jax.numpy as jnp
from jax.experimental import pallas as pl
from jax.experimental.pallas import tpu as pltpu


# ----------------------------------------------------------------------------
# In-kernel helpers
# ----------------------------------------------------------------------------
def _mm(a, b):
    """MXU matmul: bf16 operands, f32 accumulation."""
    return jnp.dot(a.astype(jnp.bfloat16), b.astype(jnp.bfloat16),
                   preferred_element_type=jnp.float32)


def _mm_nt(a, b):
    """a @ b.T (contract last dims, no materialized transpose), bf16 -> f32."""
    return jax.lax.dot_general(a.astype(jnp.bfloat16), b.astype(jnp.bfloat16),
                               (((1,), (1,)), ((), ())),
                               preferred_element_type=jnp.float32)


def _layernorm(x, gamma, beta, eps=1e-5):
    mu = jnp.mean(x, axis=-1, keepdims=True)
    var = jnp.mean((x - mu) ** 2, axis=-1, keepdims=True)
    return (x - mu) * jax.lax.rsqrt(var + eps) * gamma + beta


# ----------------------------------------------------------------------------
# Fused ViT forward kernel: one grid step == one batch element's sequence
# ----------------------------------------------------------------------------
def vit_kernel(xp_ref, pw_ref, pb_ref, pe_ref,
               wqkv_ref, wo_ref, bo_ref, g_ref, bt_ref,
               fg_ref, fb_ref, fc_ref, o_ref,
               *, num_layers, num_heads, d_k):
    D = num_heads * d_k
    scale = 1.0 / math.sqrt(d_k)

    # ---- patch embedding + positional encoding: (P, F) @ (F, D) -> (P, D) ----
    src = _mm(xp_ref[0], pw_ref[...]) + pb_ref[...] + pe_ref[...]   # f32 (P, D)

    # ---- encoder layers (fori_loop over stacked, VMEM-resident weights) ------
    def layer_body(l, src):
        # Fused QKV projection: single full-width matmul (P, D) @ (D, 3D).
        qkv = _mm(src, wqkv_ref[l])                                  # (P, 3D) f32
        heads = []
        for h in range(num_heads):                                   # static lane slices
            q = qkv[:, h * d_k:(h + 1) * d_k]
            k = qkv[:, D + h * d_k:D + (h + 1) * d_k]
            v = qkv[:, 2 * D + h * d_k:2 * D + (h + 1) * d_k]
            s = _mm_nt(q, k) * scale                                 # (P, P) f32
            m = jnp.max(s, axis=-1, keepdims=True)
            e = jnp.exp(s - m)
            p = e * pl.reciprocal(jnp.sum(e, axis=-1, keepdims=True), approx=True)
            heads.append(_mm(p, v))                                  # (P, d_k)
        concat = jnp.concatenate(heads, axis=-1)                     # (P, D)
        attn = _mm(concat, wo_ref[l]) + bo_ref[l]                    # single out-proj
        return _layernorm(src + attn, g_ref[l], bt_ref[l])           # residual + LN

    src = jax.lax.fori_loop(0, num_layers, layer_body, src)

    # ---- head: final LayerNorm -> mean-pool over patches -> projection -------
    xn = _layernorm(src, fg_ref[...], fb_ref[...])                   # (P, D)
    pooled = jnp.mean(xn, axis=0, keepdims=True)                     # (1, D)
    o_ref[0] = _mm(pooled, fc_ref[...])                              # (1, O)


# ----------------------------------------------------------------------------
# Wrapper: layout plumbing + pallas_call
# ----------------------------------------------------------------------------
def _extract_patches(x_nhwc, ph, pw):
    """(B, H, W, C) -> (B, num_patches, C*ph*pw), matching torch unfold order."""
    B, H, W, C = x_nhwc.shape
    nph, npw = H // ph, W // pw
    x = x_nhwc.reshape(B, nph, ph, npw, pw, C)
    x = jnp.transpose(x, (0, 1, 3, 5, 2, 4))          # (B, nph, npw, C, ph, pw)
    return x.reshape(B, nph * npw, C * ph * pw)


def prepare_fused_params(params, num_heads):
    """One-time (out of the per-forward path) stacking + bf16 cast of weights."""
    layers = params["layers"]
    wqkv = jnp.stack([jnp.concatenate([lp["wq"], lp["wk"], lp["wv"]], axis=1)
                      for lp in layers]).astype(jnp.bfloat16)          # (L, D, 3D)
    wo = jnp.stack([lp["wo"] for lp in layers]).astype(jnp.bfloat16)   # (L, D, D)
    bo = jnp.stack([lp["bo"] for lp in layers])                        # (L, 1, D) f32
    gamma = jnp.stack([lp["gamma"] for lp in layers])                  # (L, 1, D) f32
    beta = jnp.stack([lp["beta"] for lp in layers])                    # (L, 1, D) f32
    return {
        "proj_w": params["proj_w"].astype(jnp.bfloat16),               # (F, D)
        "proj_b": params["proj_b"],                                    # (1, D) f32
        "pos_enc": params["pos_enc"][0],                               # (P, D) f32
        "wqkv": wqkv, "wo": wo, "bo": bo, "gamma": gamma, "beta": beta,
        "final_gamma": params["final_gamma"],                          # (1, D) f32
        "final_beta": params["final_beta"],                            # (1, D) f32
        "fc_out_w": params["fc_out_w"].astype(jnp.bfloat16),           # (D, O)
    }


@functools.partial(jax.jit, static_argnames=("img_height", "img_width",
                                             "patch_size_h", "patch_size_w",
                                             "num_heads"))
def vision_transformer_forward(fused, x, *, img_height, img_width,
                               patch_size_h, patch_size_w, num_heads):
    B = x.shape[0]
    # torch: x.view(B, H, W, -1) on a contiguous (B, C, H, W) tensor == raw reshape.
    x_nhwc = x.reshape(B, img_height, img_width, -1)
    xp = _extract_patches(x_nhwc, patch_size_h, patch_size_w)          # (B, P, F)
    _, P, F = xp.shape
    D = fused["proj_b"].shape[-1]
    O = fused["fc_out_w"].shape[1]
    L = fused["wqkv"].shape[0]
    d_k = D // num_heads

    kernel = functools.partial(vit_kernel, num_layers=L,
                               num_heads=num_heads, d_k=d_k)

    def full(shape):
        # Whole-array block, same block for every grid step (stays VMEM-resident).
        return pl.BlockSpec(shape, lambda b, _s=shape: (0,) * len(_s))

    out = pl.pallas_call(
        kernel,
        grid=(B,),
        out_shape=jax.ShapeDtypeStruct((B, 1, O), jnp.float32),
        in_specs=[
            pl.BlockSpec((1, P, F), lambda b: (b, 0, 0)),   # per-batch patch block
            full((F, D)),                                   # proj_w
            full((1, D)),                                   # proj_b
            full((P, D)),                                    # pos_enc
            full((L, D, 3 * D)),                             # fused QKV weights
            full((L, D, D)),                                 # out-proj weights
            full((L, 1, D)),                                 # out-proj bias
            full((L, 1, D)),                                 # LN gamma
            full((L, 1, D)),                                 # LN beta
            full((1, D)),                                    # final LN gamma
            full((1, D)),                                    # final LN beta
            full((D, O)),                                    # fc_out_w
        ],
        out_specs=pl.BlockSpec((1, 1, O), lambda b: (b, 0, 0)),
        compiler_params=pltpu.CompilerParams(
            dimension_semantics=("parallel",),               # shard batch across TCs (v7x)
            vmem_limit_bytes=32 * 1024 * 1024),
    )(xp, fused["proj_w"], fused["proj_b"], fused["pos_enc"],
      fused["wqkv"], fused["wo"], fused["bo"], fused["gamma"], fused["beta"],
      fused["final_gamma"], fused["final_beta"], fused["fc_out_w"])
    return out.reshape(B, O)


# ----------------------------------------------------------------------------
# Parameter init (matches the PyTorch module's architecture; (in, out) layout)
# ----------------------------------------------------------------------------
def init_params(key, flatten_dim, bond_dim, num_patches, num_layers, output_dim):
    keys = jax.random.split(key, 4 + 5 * num_layers)
    ki = iter(keys)
    s = 0.02
    params = {
        "proj_w": s * jax.random.normal(next(ki), (flatten_dim, bond_dim), jnp.float32),
        "proj_b": s * jax.random.normal(next(ki), (1, bond_dim), jnp.float32),
        "pos_enc": jax.random.normal(next(ki), (1, num_patches, bond_dim), jnp.float32),
        "fc_out_w": s * jax.random.normal(next(ki), (bond_dim, output_dim), jnp.float32),
        "final_gamma": jnp.ones((1, bond_dim), jnp.float32),
        "final_beta": jnp.zeros((1, bond_dim), jnp.float32),
        "layers": [],
    }
    for _ in range(num_layers):
        params["layers"].append({
            "wq": s * jax.random.normal(next(ki), (bond_dim, bond_dim), jnp.float32),
            "wk": s * jax.random.normal(next(ki), (bond_dim, bond_dim), jnp.float32),
            "wv": s * jax.random.normal(next(ki), (bond_dim, bond_dim), jnp.float32),
            "wo": s * jax.random.normal(next(ki), (bond_dim, bond_dim), jnp.float32),
            "bo": s * jax.random.normal(next(ki), (1, bond_dim), jnp.float32),
            "gamma": jnp.ones((1, bond_dim), jnp.float32),
            "beta": jnp.zeros((1, bond_dim), jnp.float32),
        })
    return params


if __name__ == "__main__":
    # Small, module-consistent config
    img_height, img_width = 16, 16
    patch_size_h, patch_size_w = 4, 4
    input_dim = 4          # image channels
    num_heads = 4
    num_layers = 2
    bond_dim = 32
    output_dim = 8
    batch = 2

    flatten_dim = patch_size_h * patch_size_w * input_dim                     # 64
    num_patches = (img_height // patch_size_h) * (img_width // patch_size_w)  # 16

    key = jax.random.PRNGKey(0)
    kx, kp = jax.random.split(key)
    # NCHW input, exactly as the PyTorch module receives it.
    x = jax.random.normal(kx, (batch, input_dim, img_height, img_width), jnp.float32)
    params = init_params(kp, flatten_dim, bond_dim, num_patches, num_layers, output_dim)

    # Weight stacking / bf16 cast done once, outside the per-forward path.
    fused = prepare_fused_params(params, num_heads)

    out = vision_transformer_forward(
        fused, x,
        img_height=img_height, img_width=img_width,
        patch_size_h=patch_size_h, patch_size_w=patch_size_w,
        num_heads=num_heads)
    out = jax.block_until_ready(out)

    assert out.shape == (batch, output_dim)
    assert bool(jnp.all(jnp.isfinite(out)))
    print("KERNEL_OK")
</pallas_src>

<mosaic_0001>
module attributes {stable_mosaic.version = 11 : i64} {
  func.func @vit_kernel(%arg0: i32, %arg1: memref<1x16x64xf32, #tpu.memory_space<vmem>>, %arg2: memref<64x32xbf16, #tpu.memory_space<vmem>>, %arg3: memref<1x32xf32, #tpu.memory_space<vmem>>, %arg4: memref<16x32xf32, #tpu.memory_space<vmem>>, %arg5: memref<2x32x96xbf16, #tpu.memory_space<vmem>>, %arg6: memref<2x32x32xbf16, #tpu.memory_space<vmem>>, %arg7: memref<2x1x32xf32, #tpu.memory_space<vmem>>, %arg8: memref<2x1x32xf32, #tpu.memory_space<vmem>>, %arg9: memref<2x1x32xf32, #tpu.memory_space<vmem>>, %arg10: memref<1x32xf32, #tpu.memory_space<vmem>>, %arg11: memref<1x32xf32, #tpu.memory_space<vmem>>, %arg12: memref<32x8xbf16, #tpu.memory_space<vmem>>, %arg13: memref<1x1x8xf32, #tpu.memory_space<vmem>>) attributes {dimension_semantics = [#tpu.dimension_semantics<parallel>], iteration_bounds = array<i64: 2>, scalar_prefetch = 0 : i64, scratch_operands = 0 : i64, tpu.core_type = #tpu.core_type<tc>, window_params = [{transform_indices = @transform_0, window_bounds = array<i64: 1, 16, 64>}, {pipeline_mode = #tpu.pipeline_mode<synchronous>, transform_indices = @transform_1, window_bounds = array<i64: 64, 32>}, {pipeline_mode = #tpu.pipeline_mode<synchronous>, transform_indices = @transform_2, window_bounds = array<i64: 1, 32>}, {pipeline_mode = #tpu.pipeline_mode<synchronous>, transform_indices = @transform_3, window_bounds = array<i64: 16, 32>}, {pipeline_mode = #tpu.pipeline_mode<synchronous>, transform_indices = @transform_4, window_bounds = array<i64: 2, 32, 96>}, {pipeline_mode = #tpu.pipeline_mode<synchronous>, transform_indices = @transform_5, window_bounds = array<i64: 2, 32, 32>}, {pipeline_mode = #tpu.pipeline_mode<synchronous>, transform_indices = @transform_6, window_bounds = array<i64: 2, 1, 32>}, {pipeline_mode = #tpu.pipeline_mode<synchronous>, transform_indices = @transform_7, window_bounds = array<i64: 2, 1, 32>}, {pipeline_mode = #tpu.pipeline_mode<synchronous>, transform_indices = @transform_8, window_bounds = array<i64: 2, 1, 32>}, {pipeline_mode = #tpu.pipeline_mode<synchronous>, transform_indices = @transform_9, window_bounds = array<i64: 1, 32>}, {pipeline_mode = #tpu.pipeline_mode<synchronous>, transform_indices = @transform_10, window_bounds = array<i64: 1, 32>}, {pipeline_mode = #tpu.pipeline_mode<synchronous>, transform_indices = @transform_11, window_bounds = array<i64: 32, 8>}, {transform_indices = @transform_12, window_bounds = array<i64: 1, 1, 8>}]} {
    %c0 = arith.constant 0 : index
    %c0_0 = arith.constant 0 : index
    %c0_1 = arith.constant 0 : index
    %0 = vector.load %arg1[%c0, %c0_0, %c0_1] : memref<1x16x64xf32, #tpu.memory_space<vmem>>, vector<1x16x64xf32>
    %1 = vector.shape_cast %0 : vector<1x16x64xf32> to vector<16x64xf32>
    %c0_2 = arith.constant 0 : index
    %c0_3 = arith.constant 0 : index
    %2 = vector.load %arg2[%c0_2, %c0_3] : memref<64x32xbf16, #tpu.memory_space<vmem>>, vector<64x32xbf16>
    %3 = arith.truncf %1 : vector<16x64xf32> to vector<16x64xbf16>
    %cst = arith.constant dense<0.000000e+00> : vector<16x32xf32>
    %4 = tpu.matmul %3, %2, %cst {dimension_numbers = #tpu.dot_dimension_numbers<[1], [0], [0], [1], [0, 0, 1, 1], [], []>} : vector<16x64xbf16>, vector<64x32xbf16>, vector<16x32xf32> -> vector<16x32xf32>
    %c0_4 = arith.constant 0 : index
    %c0_5 = arith.constant 0 : index
    %5 = vector.load %arg3[%c0_4, %c0_5] : memref<1x32xf32, #tpu.memory_space<vmem>>, vector<1x32xf32>
    %6 = vector.broadcast %5 : vector<1x32xf32> to vector<16x32xf32>
    %7 = arith.addf %4, %6 : vector<16x32xf32>
    %c0_6 = arith.constant 0 : index
    %c0_7 = arith.constant 0 : index
    %8 = vector.load %arg4[%c0_6, %c0_7] : memref<16x32xf32, #tpu.memory_space<vmem>>, vector<16x32xf32>
    %9 = arith.addf %7, %8 : vector<16x32xf32>
    %c0_i32 = arith.constant 0 : i32
    %c2_i32 = arith.constant 2 : i32
    %10 = arith.addi %c0_i32, %c2_i32 : i32
    %c1_i32 = arith.constant 1 : i32
    %11 = scf.for %arg14 = %c0_i32 to %10 step %c1_i32 iter_args(%arg15 = %9) -> (vector<16x32xf32>)  : i32 {
      %46 = arith.index_cast %arg14 : i32 to index
      %c0_26 = arith.constant 0 : index
      %c0_27 = arith.constant 0 : index
      %47 = vector.load %arg5[%46, %c0_26, %c0_27] : memref<2x32x96xbf16, #tpu.memory_space<vmem>>, vector<1x32x96xbf16>
      %48 = vector.shape_cast %47 : vector<1x32x96xbf16> to vector<32x96xbf16>
      %49 = arith.truncf %arg15 : vector<16x32xf32> to vector<16x32xbf16>
      %cst_28 = arith.constant dense<0.000000e+00> : vector<16x96xf32>
      %50 = tpu.matmul %49, %48, %cst_28 {dimension_numbers = #tpu.dot_dimension_numbers<[1], [0], [0], [1], [0, 0, 1, 1], [], []>} : vector<16x32xbf16>, vector<32x96xbf16>, vector<16x96xf32> -> vector<16x96xf32>
      %51 = vector.extract_strided_slice %50 {offsets = [0, 0], sizes = [16, 8], strides = [1, 1]} : vector<16x96xf32> to vector<16x8xf32>
      %52 = vector.extract_strided_slice %50 {offsets = [0, 32], sizes = [16, 8], strides = [1, 1]} : vector<16x96xf32> to vector<16x8xf32>
      %53 = vector.extract_strided_slice %50 {offsets = [0, 64], sizes = [16, 8], strides = [1, 1]} : vector<16x96xf32> to vector<16x8xf32>
      %54 = arith.truncf %51 : vector<16x8xf32> to vector<16x8xbf16>
      %55 = arith.truncf %52 : vector<16x8xf32> to vector<16x8xbf16>
      %cst_29 = arith.constant dense<0.000000e+00> : vector<16x16xf32>
      %56 = tpu.matmul %54, %55, %cst_29 {dimension_numbers = #tpu.dot_dimension_numbers<[1], [1], [0], [0], [0, 0, 1, 0], [], []>} : vector<16x8xbf16>, vector<16x8xbf16>, vector<16x16xf32> -> vector<16x16xf32>
      %cst_30 = arith.constant 0.353553385 : f32
      %57 = vector.broadcast %cst_30 : f32 to vector<16x16xf32>
      %58 = arith.mulf %56, %57 : vector<16x16xf32>
      %cst_31 = arith.constant dense<0xFF800000> : vector<16xf32>
      %59 = vector.multi_reduction <maximumf>, %58, %cst_31 [1] : vector<16x16xf32> to vector<16xf32>
      %60 = vector.shape_cast %59 : vector<16xf32> to vector<16x1xf32>
      %61 = vector.broadcast %60 : vector<16x1xf32> to vector<16x16xf32>
      %62 = arith.subf %58, %61 : vector<16x16xf32>
      %63 = math.exp %62 : vector<16x16xf32>
      %cst_32 = arith.constant dense<0.000000e+00> : vector<16xf32>
      %64 = vector.multi_reduction <add>, %63, %cst_32 [1] : vector<16x16xf32> to vector<16xf32>
      %65 = vector.shape_cast %64 : vector<16xf32> to vector<16x1xf32>
      %66 = tpu.reciprocal %65 {approx = true} : vector<16x1xf32> -> vector<16x1xf32>
      %67 = vector.broadcast %66 : vector<16x1xf32> to vector<16x16xf32>
      %68 = arith.mulf %63, %67 : vector<16x16xf32>
      %69 = arith.truncf %68 : vector<16x16xf32> to vector<16x16xbf16>
      %70 = arith.truncf %53 : vector<16x8xf32> to vector<16x8xbf16>
      %cst_33 = arith.constant dense<0.000000e+00> : vector<16x8xf32>
      %71 = tpu.matmul %69, %70, %cst_33 {dimension_numbers = #tpu.dot_dimension_numbers<[1], [0], [0], [1], [0, 0, 1, 1], [], []>} : vector<16x16xbf16>, vector<16x8xbf16>, vector<16x8xf32> -> vector<16x8xf32>
      %72 = vector.extract_strided_slice %50 {offsets = [0, 8], sizes = [16, 8], strides = [1, 1]} : vector<16x96xf32> to vector<16x8xf32>
      %73 = vector.extract_strided_slice %50 {offsets = [0, 40], sizes = [16, 8], strides = [1, 1]} : vector<16x96xf32> to vector<16x8xf32>
      %74 = vector.extract_strided_slice %50 {offsets = [0, 72], sizes = [16, 8], strides = [1, 1]} : vector<16x96xf32> to vector<16x8xf32>
      %75 = arith.truncf %72 : vector<16x8xf32> to vector<16x8xbf16>
      %76 = arith.truncf %73 : vector<16x8xf32> to vector<16x8xbf16>
      %cst_34 = arith.constant dense<0.000000e+00> : vector<16x16xf32>
      %77 = tpu.matmul %75, %76, %cst_34 {dimension_numbers = #tpu.dot_dimension_numbers<[1], [1], [0], [0], [0, 0, 1, 0], [], []>} : vector<16x8xbf16>, vector<16x8xbf16>, vector<16x16xf32> -> vector<16x16xf32>
      %cst_35 = arith.constant 0.353553385 : f32
      %78 = vector.broadcast %cst_35 : f32 to vector<16x16xf32>
      %79 = arith.mulf %77, %78 : vector<16x16xf32>
      %cst_36 = arith.constant dense<0xFF800000> : vector<16xf32>
      %80 = vector.multi_reduction <maximumf>, %79, %cst_36 [1] : vector<16x16xf32> to vector<16xf32>
      %81 = vector.shape_cast %80 : vector<16xf32> to vector<16x1xf32>
      %82 = vector.broadcast %81 : vector<16x1xf32> to vector<16x16xf32>
      %83 = arith.subf %79, %82 : vector<16x16xf32>
      %84 = math.exp %83 : vector<16x16xf32>
      %cst_37 = arith.constant dense<0.000000e+00> : vector<16xf32>
      %85 = vector.multi_reduction <add>, %84, %cst_37 [1] : vector<16x16xf32> to vector<16xf32>
      %86 = vector.shape_cast %85 : vector<16xf32> to vector<16x1xf32>
      %87 = tpu.reciprocal %86 {approx = true} : vector<16x1xf32> -> vector<16x1xf32>
      %88 = vector.broadcast %87 : vector<16x1xf32> to vector<16x16xf32>
      %89 = arith.mulf %84, %88 : vector<16x16xf32>
      %90 = arith.truncf %89 : vector<16x16xf32> to vector<16x16xbf16>
      %91 = arith.truncf %74 : vector<16x8xf32> to vector<16x8xbf16>
      %cst_38 = arith.constant dense<0.000000e+00> : vector<16x8xf32>
      %92 = tpu.matmul %90, %91, %cst_38 {dimension_numbers = #tpu.dot_dimension_numbers<[1], [0], [0], [1], [0, 0, 1, 1], [], []>} : vector<16x16xbf16>, vector<16x8xbf16>, vector<16x8xf32> -> vector<16x8xf32>
      %93 = vector.extract_strided_slice %50 {offsets = [0, 16], sizes = [16, 8], strides = [1, 1]} : vector<16x96xf32> to vector<16x8xf32>
      %94 = vector.extract_strided_slice %50 {offsets = [0, 48], sizes = [16, 8], strides = [1, 1]} : vector<16x96xf32> to vector<16x8xf32>
      %95 = vector.extract_strided_slice %50 {offsets = [0, 80], sizes = [16, 8], strides = [1, 1]} : vector<16x96xf32> to vector<16x8xf32>
      %96 = arith.truncf %93 : vector<16x8xf32> to vector<16x8xbf16>
      %97 = arith.truncf %94 : vector<16x8xf32> to vector<16x8xbf16>
      %cst_39 = arith.constant dense<0.000000e+00> : vector<16x16xf32>
      %98 = tpu.matmul %96, %97, %cst_39 {dimension_numbers = #tpu.dot_dimension_numbers<[1], [1], [0], [0], [0, 0, 1, 0], [], []>} : vector<16x8xbf16>, vector<16x8xbf16>, vector<16x16xf32> -> vector<16x16xf32>
      %cst_40 = arith.constant 0.353553385 : f32
      %99 = vector.broadcast %cst_40 : f32 to vector<16x16xf32>
      %100 = arith.mulf %98, %99 : vector<16x16xf32>
      %cst_41 = arith.constant dense<0xFF800000> : vector<16xf32>
      %101 = vector.multi_reduction <maximumf>, %100, %cst_41 [1] : vector<16x16xf32> to vector<16xf32>
      %102 = vector.shape_cast %101 : vector<16xf32> to vector<16x1xf32>
      %103 = vector.broadcast %102 : vector<16x1xf32> to vector<16x16xf32>
      %104 = arith.subf %100, %103 : vector<16x16xf32>
      %105 = math.exp %104 : vector<16x16xf32>
      %cst_42 = arith.constant dense<0.000000e+00> : vector<16xf32>
      %106 = vector.multi_reduction <add>, %105, %cst_42 [1] : vector<16x16xf32> to vector<16xf32>
      %107 = vector.shape_cast %106 : vector<16xf32> to vector<16x1xf32>
      %108 = tpu.reciprocal %107 {approx = true} : vector<16x1xf32> -> vector<16x1xf32>
      %109 = vector.broadcast %108 : vector<16x1xf32> to vector<16x16xf32>
      %110 = arith.mulf %105, %109 : vector<16x16xf32>
      %111 = arith.truncf %110 : vector<16x16xf32> to vector<16x16xbf16>
      %112 = arith.truncf %95 : vector<16x8xf32> to vector<16x8xbf16>
      %cst_43 = arith.constant dense<0.000000e+00> : vector<16x8xf32>
      %113 = tpu.matmul %111, %112, %cst_43 {dimension_numbers = #tpu.dot_dimension_numbers<[1], [0], [0], [1], [0, 0, 1, 1], [], []>} : vector<16x16xbf16>, vector<16x8xbf16>, vector<16x8xf32> -> vector<16x8xf32>
      %114 = vector.extract_strided_slice %50 {offsets = [0, 24], sizes = [16, 8], strides = [1, 1]} : vector<16x96xf32> to vector<16x8xf32>
      %115 = vector.extract_strided_slice %50 {offsets = [0, 56], sizes = [16, 8], strides = [1, 1]} : vector<16x96xf32> to vector<16x8xf32>
      %116 = vector.extract_strided_slice %50 {offsets = [0, 88], sizes = [16, 8], strides = [1, 1]} : vector<16x96xf32> to vector<16x8xf32>
      %117 = arith.truncf %114 : vector<16x8xf32> to vector<16x8xbf16>
      %118 = arith.truncf %115 : vector<16x8xf32> to vector<16x8xbf16>
      %cst_44 = arith.constant dense<0.000000e+00> : vector<16x16xf32>
      %119 = tpu.matmul %117, %118, %cst_44 {dimension_numbers = #tpu.dot_dimension_numbers<[1], [1], [0], [0], [0, 0, 1, 0], [], []>} : vector<16x8xbf16>, vector<16x8xbf16>, vector<16x16xf32> -> vector<16x16xf32>
      %cst_45 = arith.constant 0.353553385 : f32
      %120 = vector.broadcast %cst_45 : f32 to vector<16x16xf32>
      %121 = arith.mulf %119, %120 : vector<16x16xf32>
      %cst_46 = arith.constant dense<0xFF800000> : vector<16xf32>
      %122 = vector.multi_reduction <maximumf>, %121, %cst_46 [1] : vector<16x16xf32> to vector<16xf32>
      %123 = vector.shape_cast %122 : vector<16xf32> to vector<16x1xf32>
      %124 = vector.broadcast %123 : vector<16x1xf32> to vector<16x16xf32>
      %125 = arith.subf %121, %124 : vector<16x16xf32>
      %126 = math.exp %125 : vector<16x16xf32>
      %cst_47 = arith.constant dense<0.000000e+00> : vector<16xf32>
      %127 = vector.multi_reduction <add>, %126, %cst_47 [1] : vector<16x16xf32> to vector<16xf32>
      %128 = vector.shape_cast %127 : vector<16xf32> to vector<16x1xf32>
      %129 = tpu.reciprocal %128 {approx = true} : vector<16x1xf32> -> vector<16x1xf32>
      %130 = vector.broadcast %129 : vector<16x1xf32> to vector<16x16xf32>
      %131 = arith.mulf %126, %130 : vector<16x16xf32>
      %132 = arith.truncf %131 : vector<16x16xf32> to vector<16x16xbf16>
      %133 = arith.truncf %116 : vector<16x8xf32> to vector<16x8xbf16>
      %cst_48 = arith.constant dense<0.000000e+00> : vector<16x8xf32>
      %134 = tpu.matmul %132, %133, %cst_48 {dimension_numbers = #tpu.dot_dimension_numbers<[1], [0], [0], [1], [0, 0, 1, 1], [], []>} : vector<16x16xbf16>, vector<16x8xbf16>, vector<16x8xf32> -> vector<16x8xf32>
      %135 = tpu.concatenate %71, %92, %113, %134 in 1 : vector<16x8xf32>, vector<16x8xf32>, vector<16x8xf32>, vector<16x8xf32> -> vector<16x32xf32>
      %136 = arith.index_cast %arg14 : i32 to index
      %c0_49 = arith.constant 0 : index
      %c0_50 = arith.constant 0 : index
      %137 = vector.load %arg6[%136, %c0_49, %c0_50] : memref<2x32x32xbf16, #tpu.memory_space<vmem>>, vector<1x32x32xbf16>
      %138 = vector.shape_cast %137 : vector<1x32x32xbf16> to vector<32x32xbf16>
      %139 = arith.truncf %135 : vector<16x32xf32> to vector<16x32xbf16>
      %cst_51 = arith.constant dense<0.000000e+00> : vector<16x32xf32>
      %140 = tpu.matmul %139, %138, %cst_51 {dimension_numbers = #tpu.dot_dimension_numbers<[1], [0], [0], [1], [0, 0, 1, 1], [], []>} : vector<16x32xbf16>, vector<32x32xbf16>, vector<16x32xf32> -> vector<16x32xf32>
      %141 = arith.index_cast %arg14 : i32 to index
      %c0_52 = arith.constant 0 : index
      %c0_53 = arith.constant 0 : index
      %142 = vector.load %arg7[%141, %c0_52, %c0_53] : memref<2x1x32xf32, #tpu.memory_space<vmem>>, vector<1x1x32xf32>
      %143 = vector.shape_cast %142 : vector<1x1x32xf32> to vector<1x32xf32>
      %144 = vector.broadcast %143 : vector<1x32xf32> to vector<16x32xf32>
      %145 = arith.addf %140, %144 : vector<16x32xf32>
      %146 = arith.addf %arg15, %145 : vector<16x32xf32>
      %147 = arith.index_cast %arg14 : i32 to index
      %c0_54 = arith.constant 0 : index
      %c0_55 = arith.constant 0 : index
      %148 = vector.load %arg8[%147, %c0_54, %c0_55] : memref<2x1x32xf32, #tpu.memory_space<vmem>>, vector<1x1x32xf32>
      %149 = vector.shape_cast %148 : vector<1x1x32xf32> to vector<1x32xf32>
      %150 = arith.index_cast %arg14 : i32 to index
      %c0_56 = arith.constant 0 : index
      %c0_57 = arith.constant 0 : index
      %151 = vector.load %arg9[%150, %c0_56, %c0_57] : memref<2x1x32xf32, #tpu.memory_space<vmem>>, vector<1x1x32xf32>
      %152 = vector.shape_cast %151 : vector<1x1x32xf32> to vector<1x32xf32>
      %cst_58 = arith.constant dense<0.000000e+00> : vector<16xf32>
      %153 = vector.multi_reduction <add>, %146, %cst_58 [1] : vector<16x32xf32> to vector<16xf32>
      %154 = vector.shape_cast %153 : vector<16xf32> to vector<16x1xf32>
      %cst_59 = arith.constant 3.200000e+01 : f32
      %155 = vector.broadcast %cst_59 : f32 to vector<16x1xf32>
      %156 = arith.divf %154, %155 : vector<16x1xf32>
      %157 = vector.broadcast %156 : vector<16x1xf32> to vector<16x32xf32>
      %158 = arith.subf %146, %157 : vector<16x32xf32>
      %159 = arith.mulf %158, %158 : vector<16x32xf32>
      %cst_60 = arith.constant dense<0.000000e+00> : vector<16xf32>
      %160 = vector.multi_reduction <add>, %159, %cst_60 [1] : vector<16x32xf32> to vector<16xf32>
      %161 = vector.shape_cast %160 : vector<16xf32> to vector<16x1xf32>
      %cst_61 = arith.constant 3.200000e+01 : f32
      %162 = vector.broadcast %cst_61 : f32 to vector<16x1xf32>
      %163 = arith.divf %161, %162 : vector<16x1xf32>
      %164 = vector.broadcast %156 : vector<16x1xf32> to vector<16x32xf32>
      %165 = arith.subf %146, %164 : vector<16x32xf32>
      %cst_62 = arith.constant 9.99999974E-6 : f32
      %166 = vector.broadcast %cst_62 : f32 to vector<16x1xf32>
      %167 = arith.addf %163, %166 : vector<16x1xf32>
      %168 = math.rsqrt %167 : vector<16x1xf32>
      %169 = vector.broadcast %168 : vector<16x1xf32> to vector<16x32xf32>
      %170 = arith.mulf %165, %169 : vector<16x32xf32>
      %171 = vector.broadcast %149 : vector<1x32xf32> to vector<16x32xf32>
      %172 = arith.mulf %170, %171 : vector<16x32xf32>
      %173 = vector.broadcast %152 : vector<1x32xf32> to vector<16x32xf32>
      %174 = arith.addf %172, %173 : vector<16x32xf32>
      scf.yield %174 : vector<16x32xf32>
    }
    %c2_i32_8 = arith.constant 2 : i32
    %c0_9 = arith.constant 0 : index
    %c0_10 = arith.constant 0 : index
    %12 = vector.load %arg10[%c0_9, %c0_10] : memref<1x32xf32, #tpu.memory_space<vmem>>, vector<1x32xf32>
    %c0_11 = arith.constant 0 : index
    %c0_12 = arith.constant 0 : index
    %13 = vector.load %arg11[%c0_11, %c0_12] : memref<1x32xf32, #tpu.memory_space<vmem>>, vector<1x32xf32>
    %cst_13 = arith.constant dense<0.000000e+00> : vector<16xf32>
    %14 = vector.multi_reduction <add>, %11, %cst_13 [1] : vector<16x32xf32> to vector<16xf32>
    %15 = vector.shape_cast %14 : vector<16xf32> to vector<16x1xf32>
    %cst_14 = arith.constant 3.200000e+01 : f32
    %16 = vector.broadcast %cst_14 : f32 to vector<16x1xf32>
    %17 = arith.divf %15, %16 : vector<16x1xf32>
    %18 = vector.broadcast %17 : vector<16x1xf32> to vector<16x32xf32>
    %19 = arith.subf %11, %18 : vector<16x32xf32>
    %20 = arith.mulf %19, %19 : vector<16x32xf32>
    %cst_15 = arith.constant dense<0.000000e+00> : vector<16xf32>
    %21 = vector.multi_reduction <add>, %20, %cst_15 [1] : vector<16x32xf32> to vector<16xf32>
    %22 = vector.shape_cast %21 : vector<16xf32> to vector<16x1xf32>
    %cst_16 = arith.constant 3.200000e+01 : f32
    %23 = vector.broadcast %cst_16 : f32 to vector<16x1xf32>
    %24 = arith.divf %22, %23 : vector<16x1xf32>
    %25 = vector.broadcast %17 : vector<16x1xf32> to vector<16x32xf32>
    %26 = arith.subf %11, %25 : vector<16x32xf32>
    %cst_17 = arith.constant 9.99999974E-6 : f32
    %27 = vector.broadcast %cst_17 : f32 to vector<16x1xf32>
    %28 = arith.addf %24, %27 : vector<16x1xf32>
    %29 = math.rsqrt %28 : vector<16x1xf32>
    %30 = vector.broadcast %29 : vector<16x1xf32> to vector<16x32xf32>
    %31 = arith.mulf %26, %30 : vector<16x32xf32>
    %32 = vector.broadcast %12 : vector<1x32xf32> to vector<16x32xf32>
    %33 = arith.mulf %31, %32 : vector<16x32xf32>
    %34 = vector.broadcast %13 : vector<1x32xf32> to vector<16x32xf32>
    %35 = arith.addf %33, %34 : vector<16x32xf32>
    %cst_18 = arith.constant dense<0.000000e+00> : vector<32xf32>
    %36 = vector.multi_reduction <add>, %35, %cst_18 [0] : vector<16x32xf32> to vector<32xf32>
    %37 = vector.shape_cast %36 : vector<32xf32> to vector<1x32xf32>
    %cst_19 = arith.constant 1.600000e+01 : f32
    %38 = vector.broadcast %cst_19 : f32 to vector<1x32xf32>
    %39 = arith.divf %37, %38 : vector<1x32xf32>
    %c0_20 = arith.constant 0 : index
    %c0_21 = arith.constant 0 : index
    %40 = vector.load %arg12[%c0_20, %c0_21] : memref<32x8xbf16, #tpu.memory_space<vmem>>, vector<32x8xbf16>
    %41 = arith.truncf %39 : vector<1x32xf32> to vector<1x32xbf16>
    %cst_22 = arith.constant dense<0.000000e+00> : vector<1x8xf32>
    %42 = tpu.matmul %41, %40, %cst_22 {dimension_numbers = #tpu.dot_dimension_numbers<[1], [0], [0], [1], [0, 0, 1, 1], [], []>} : vector<1x32xbf16>, vector<32x8xbf16>, vector<1x8xf32> -> vector<1x8xf32>
    %c0_23 = arith.constant 0 : index
    %c0_24 = arith.constant 0 : index
    %c0_25 = arith.constant 0 : index
    %43 = vector.load %arg13[%c0_23, %c0_24, %c0_25] : memref<1x1x8xf32, #tpu.memory_space<vmem>>, vector<1x1x8xf32>
    %44 = vector.shape_cast %43 : vector<1x1x8xf32> to vector<1x8xf32>
    %45 = vector.shape_cast %42 : vector<1x8xf32> to vector<1x1x8xf32>
    tpu.vector_store %arg13[%c0_23, %c0_24, %c0_25], %45 {strides = array<i32>} : memref<1x1x8xf32, #tpu.memory_space<vmem>>, vector<1x1x8xf32>,
    return
  }
  func.func @transform_0(%arg0: i32) -> (i32, i32, i32) {
    %c0_i32 = arith.constant 0 : i32
    %c0_i32_0 = arith.constant 0 : i32
    %c0_i32_1 = arith.constant 0 : i32
    return %arg0, %c0_i32, %c0_i32_0 : i32, i32, i32
  }
  func.func @transform_1(%arg0: i32) -> (i32, i32) {
    %c0_i32 = arith.constant 0 : i32
    %c0_i32_0 = arith.constant 0 : i32
    %c0_i32_1 = arith.constant 0 : i32
    return %c0_i32, %c0_i32_0 : i32, i32
  }
  func.func @transform_2(%arg0: i32) -> (i32, i32) {
    %c0_i32 = arith.constant 0 : i32
    %c0_i32_0 = arith.constant 0 : i32
    %c0_i32_1 = arith.constant 0 : i32
    return %c0_i32, %c0_i32_0 : i32, i32
  }
  func.func @transform_3(%arg0: i32) -> (i32, i32) {
    %c0_i32 = arith.constant 0 : i32
    %c0_i32_0 = arith.constant 0 : i32
    %c0_i32_1 = arith.constant 0 : i32
    return %c0_i32, %c0_i32_0 : i32, i32
  }
  func.func @transform_4(%arg0: i32) -> (i32, i32, i32) {
    %c0_i32 = arith.constant 0 : i32
    %c0_i32_0 = arith.constant 0 : i32
    %c0_i32_1 = arith.constant 0 : i32
    %c0_i32_2 = arith.constant 0 : i32
    return %c0_i32, %c0_i32_0, %c0_i32_1 : i32, i32, i32
  }
  func.func @transform_5(%arg0: i32) -> (i32, i32, i32) {
    %c0_i32 = arith.constant 0 : i32
    %c0_i32_0 = arith.constant 0 : i32
    %c0_i32_1 = arith.constant 0 : i32
    %c0_i32_2 = arith.constant 0 : i32
    return %c0_i32, %c0_i32_0, %c0_i32_1 : i32, i32, i32
  }
  func.func @transform_6(%arg0: i32) -> (i32, i32, i32) {
    %c0_i32 = arith.constant 0 : i32
    %c0_i32_0 = arith.constant 0 : i32
    %c0_i32_1 = arith.constant 0 : i32
    %c0_i32_2 = arith.constant 0 : i32
    return %c0_i32, %c0_i32_0, %c0_i32_1 : i32, i32, i32
  }
  func.func @transform_7(%arg0: i32) -> (i32, i32, i32) {
    %c0_i32 = arith.constant 0 : i32
    %c0_i32_0 = arith.constant 0 : i32
    %c0_i32_1 = arith.constant 0 : i32
    %c0_i32_2 = arith.constant 0 : i32
    return %c0_i32, %c0_i32_0, %c0_i32_1 : i32, i32, i32
  }
  func.func @transform_8(%arg0: i32) -> (i32, i32, i32) {
    %c0_i32 = arith.constant 0 : i32
    %c0_i32_0 = arith.constant 0 : i32
    %c0_i32_1 = arith.constant 0 : i32
    %c0_i32_2 = arith.constant 0 : i32
    return %c0_i32, %c0_i32_0, %c0_i32_1 : i32, i32, i32
  }
  func.func @transform_9(%arg0: i32) -> (i32, i32) {
    %c0_i32 = arith.constant 0 : i32
    %c0_i32_0 = arith.constant 0 : i32
    %c0_i32_1 = arith.constant 0 : i32
    return %c0_i32, %c0_i32_0 : i32, i32
  }
  func.func @transform_10(%arg0: i32) -> (i32, i32) {
    %c0_i32 = arith.constant 0 : i32
    %c0_i32_0 = arith.constant 0 : i32
    %c0_i32_1 = arith.constant 0 : i32
    return %c0_i32, %c0_i32_0 : i32, i32
  }
  func.func @transform_11(%arg0: i32) -> (i32, i32) {
    %c0_i32 = arith.constant 0 : i32
    %c0_i32_0 = arith.constant 0 : i32
    %c0_i32_1 = arith.constant 0 : i32
    return %c0_i32, %c0_i32_0 : i32, i32
  }
  func.func @transform_12(%arg0: i32) -> (i32, i32, i32) {
    %c0_i32 = arith.constant 0 : i32
    %c0_i32_0 = arith.constant 0 : i32
    %c0_i32_1 = arith.constant 0 : i32
    return %arg0, %c0_i32, %c0_i32_0 : i32, i32, i32
  }
}

</mosaic_0001>

<llo_original>
// kernel: vision_transformer_forward.1
$region0: #{vision_transformer_forward.1}
  #allocation0 [shape = 'u32[]', space=smem, size = 0x4, offset = 0x4, fixed_abs, tag = 'smem constant byte address 0x4 - core index']
  #allocation1 [shape = 'u32[144,128]{1,0:T(1,128)}', space=vmem, size = 0x12000, scoped, tag = 'internal scratch']
  %s0 = inlined_call_operand.vmem [shape: f32[2,16,64], index: 0, kind: input, shape index: {}]
  %s1 = inlined_call_operand.vmem [shape: bf16[64,32], index: 1, kind: input, shape index: {}]
  %s2 = inlined_call_operand.vmem [shape: f32[1,32], index: 2, kind: input, shape index: {}]
  %s3 = inlined_call_operand.vmem [shape: f32[16,32], index: 3, kind: input, shape index: {}]
  %s4 = inlined_call_operand.vmem [shape: bf16[2,32,96], index: 4, kind: input, shape index: {}]
  %s5 = inlined_call_operand.vmem [shape: bf16[2,32,32], index: 5, kind: input, shape index: {}]
  %s6 = inlined_call_operand.vmem [shape: f32[2,1,32], index: 6, kind: input, shape index: {}]
  %s7 = inlined_call_operand.vmem [shape: f32[2,1,32], index: 7, kind: input, shape index: {}]
  %s8 = inlined_call_operand.vmem [shape: f32[2,1,32], index: 8, kind: input, shape index: {}]
  %s9 = inlined_call_operand.vmem [shape: f32[1,32], index: 9, kind: input, shape index: {}]
  %s10 = inlined_call_operand.vmem [shape: f32[1,32], index: 10, kind: input, shape index: {}]
  %s11 = inlined_call_operand.vmem [shape: bf16[32,8], index: 11, kind: input, shape index: {}]
  %s12 = inlined_call_operand.hbm [shape: f32[2,1,8], index: 12, kind: output, shape index: {}]
  %s13 = sld [smem:[#allocation0]]
  $region88: #{vision_transformer_forward.1} parent=0
    _
  %s15 = ssub.s32 1, %s13
  %s16 = scalar_select 0, %s15, %s13
  $region1: #{vision_transformer_forward.1} parent=0
    #allocation2 [shape = 'u8[1024]{0}', space=vmem, size = 0x400, scoped, tag = 'output window, operand 0']
    #allocation3 [shape = 's32[2]{0}', space=sflag, size = 0x8, scoped, tag = 'scoped memory for vision_transformer_forward.1']
    %17 = vsyncpa [#allocation3], 0
    %s18 = scalar_lea.sflag [#allocation3], 1
    %19 = vsyncpa %s18, 0
    loop: start=0, step=1, limit=4
    $region2: #{vision_transformer_forward.1} parent=1 // loop_pre_header
      _
    $region3: #{vision_transformer_forward.1} parent=1 // loop_header
      %s21 = sphi 0, %s25
      %p22 = scmp.ge.s32.totalorder %s21, 4
      %s31 = sphi 0, %s33
      %s34 = sphi 0, %s31
      %s35 = sphi 0, %s34
      %s51 = sphi 0, %s35
      %s55 = sphi 0, %s55
      %s57 = sphi 0, %s55
      %s58 = sphi 0, %s57
      %s72 = sphi 0, %s58
      %s76 = sphi 0, %s76
      %s78 = sphi 0, %s76
      %s79 = sphi 0, %s78
      %s93 = sphi 0, %s79
      %s97 = sphi 0, %s97
      %s99 = sphi 0, %s97
      %s100 = sphi 0, %s99
      %s114 = sphi 0, %s100
      %s118 = sphi 0, %s118
      %s120 = sphi 0, %s118
      %s121 = sphi 0, %s120
      %s135 = sphi 0, %s121
      %s139 = sphi 0, %s139
      %s141 = sphi 0, %s139
      %s142 = sphi 0, %s141
      %s156 = sphi 0, %s142
      %s160 = sphi 0, %s160
      %s162 = sphi 0, %s160
      %s163 = sphi 0, %s162
      %s177 = sphi 0, %s163
      %s181 = sphi 0, %s181
      %s183 = sphi 0, %s181
      %s184 = sphi 0, %s183
      %s198 = sphi 0, %s184
      %s202 = sphi 0, %s202
      %s204 = sphi 0, %s202
      %s205 = sphi 0, %s204
      %s219 = sphi 0, %s205
      %s223 = sphi 0, %s223
      %s225 = sphi 0, %s223
      %s226 = sphi 0, %s225
      %s240 = sphi 0, %s226
      %s244 = sphi 0, %s244
      %s246 = sphi 0, %s244
      %s247 = sphi 0, %s246
      %s261 = sphi 0, %s247
      %s265 = sphi 0, %s265
      %s267 = sphi 0, %s265
      %s268 = sphi 0, %s267
      %s282 = sphi 0, %s268
      %s288 = sphi 0, %s290
      %s291 = sphi 0, %s288
      %s292 = sphi 0, %s291
      %s308 = sphi 0, %s292
    $region4: #{vision_transformer_forward.1} parent=1 // loop_header_branch
      %24 = sbr.rel (%p22) target = $region8
    $region5: #{vision_transformer_forward.1} parent=1 // loop_body
      %s26 = ssub.s32 %s21, 1
      %s27 = ssub.s32 %s21, 2
      %s28 = sadd.s32 %s21, 1
      %s29 = ssub.s32 %s21, %s28
      %p30 = scmp.eq.s32.totalorder %s29, 0
      %s32 = sadd.s32 %s31, 1
      %s33 = scalar_select %p30, %s31, %s32
      %p36 = pneg %p30
      %p37 = scmp.eq.s32.totalorder %s21, 1
      %p38 = por %p36, %p37
      %p39 = scmp.ne.s32.totalorder %s31, %s34
      %p40 = scmp.eq.s32.totalorder %s21, 0
      %p41 = por %p39, %p40
      %p42 = scmp.ne.s32.totalorder %s31, %s34
      %p43 = scmp.eq.s32.totalorder %s26, 1
      %p44 = por %p42, %p43
      %p45 = scmp.ne.s32.totalorder %s34, %s35
      %p46 = scmp.eq.s32.totalorder %s26, 0
      %p47 = por %p45, %p46
      %p48 = scmp.ne.s32.totalorder %s34, %s35
      %p49 = scmp.eq.s32.totalorder %s27, 1
      %p50 = por %p48, %p49
      %p52 = scmp.ne.s32.totalorder %s35, %s51
      %p53 = scmp.eq.s32.totalorder %s27, 0
      %p54 = por %p52, %p53
      %s56 = sadd.s32 %s55, 1
      %p59 = scmp.eq.s32.totalorder %s21, 1
      %p60 = scmp.ne.s32.totalorder %s55, %s57
      %p61 = scmp.eq.s32.totalorder %s21, 0
      %p62 = por %p60, %p61
      %p63 = scmp.ne.s32.totalorder %s55, %s57
      %p64 = scmp.eq.s32.totalorder %s26, 1
      %p65 = por %p63, %p64
      %p66 = scmp.ne.s32.totalorder %s57, %s58
      %p67 = scmp.eq.s32.totalorder %s26, 0
      %p68 = por %p66, %p67
      %p69 = scmp.ne.s32.totalorder %s57, %s58
      %p70 = scmp.eq.s32.totalorder %s27, 1
      %p71 = por %p69, %p70
      %p73 = scmp.ne.s32.totalorder %s58, %s72
      %p74 = scmp.eq.s32.totalorder %s27, 0
      %p75 = por %p73, %p74
      %s77 = sadd.s32 %s76, 1
      %p80 = scmp.eq.s32.totalorder %s21, 1
      %p81 = scmp.ne.s32.totalorder %s76, %s78
      %p82 = scmp.eq.s32.totalorder %s21, 0
      %p83 = por %p81, %p82
      %p84 = scmp.ne.s32.totalorder %s76, %s78
      %p85 = scmp.eq.s32.totalorder %s26, 1
      %p86 = por %p84, %p85
      %p87 = scmp.ne.s32.totalorder %s78, %s79
      %p88 = scmp.eq.s32.totalorder %s26, 0
      %p89 = por %p87, %p88
      %p90 = scmp.ne.s32.totalorder %s78, %s79
      %p91 = scmp.eq.s32.totalorder %s27, 1
      %p92 = por %p90, %p91
      %p94 = scmp.ne.s32.totalorder %s79, %s93
      %p95 = scmp.eq.s32.totalorder %s27, 0
      %p96 = por %p94, %p95
      %s98 = sadd.s32 %s97, 1
      %p101 = scmp.eq.s32.totalorder %s21, 1
      %p102 = scmp.ne.s32.totalorder %s97, %s99
      %p103 = scmp.eq.s32.totalorder %s21, 0
      %p104 = por %p102, %p103
      %p105 = scmp.ne.s32.totalorder %s97, %s99
      %p106 = scmp.eq.s32.totalorder %s26, 1
      %p107 = por %p105, %p106
      %p108 = scmp.ne.s32.totalorder %s99, %s100
      %p109 = scmp.eq.s32.totalorder %s26, 0
      %p110 = por %p108, %p109
      %p111 = scmp.ne.s32.totalorder %s99, %s100
      %p112 = scmp.eq.s32.totalorder %s27, 1
      %p113 = por %p111, %p112
      %p115 = scmp.ne.s32.totalorder %s100, %s114
      %p116 = scmp.eq.s32.totalorder %s27, 0
      %p117 = por %p115, %p116
      %s119 = sadd.s32 %s118, 1
      %p122 = scmp.eq.s32.totalorder %s21, 1
      %p123 = scmp.ne.s32.totalorder %s118, %s120
      %p124 = scmp.eq.s32.totalorder %s21, 0
      %p125 = por %p123, %p124
      %p126 = scmp.ne.s32.totalorder %s118, %s120
      %p127 = scmp.eq.s32.totalorder %s26, 1
      %p128 = por %p126, %p127
      %p129 = scmp.ne.s32.totalorder %s120, %s121
      %p130 = scmp.eq.s32.totalorder %s26, 0
      %p131 = por %p129, %p130
      %p132 = scmp.ne.s32.totalorder %s120, %s121
      %p133 = scmp.eq.s32.totalorder %s27, 1
      %p134 = por %p132, %p133
      %p136 = scmp.ne.s32.totalorder %s121, %s135
      %p137 = scmp.eq.s32.totalorder %s27, 0
      %p138 = por %p136, %p137
      %s140 = sadd.s32 %s139, 1
      %p143 = scmp.eq.s32.totalorder %s21, 1
      %p144 = scmp.ne.s32.totalorder %s139, %s141
      %p145 = scmp.eq.s32.totalorder %s21, 0
      %p146 = por %p144, %p145
      %p147 = scmp.ne.s32.totalorder %s139, %s141
      %p148 = scmp.eq.s32.totalorder %s26, 1
      %p149 = por %p147, %p148
      %p150 = scmp.ne.s32.totalorder %s141, %s142
      %p151 = scmp.eq.s32.totalorder %s26, 0
      %p152 = por %p150, %p151
      %p153 = scmp.ne.s32.totalorder %s141, %s142
      %p154 = scmp.eq.s32.totalorder %s27, 1
      %p155 = por %p153, %p154
      %p157 = scmp.ne.s32.totalorder %s142, %s156
      %p158 = scmp.eq.s32.totalorder %s27, 0
      %p159 = por %p157, %p158
      %s161 = sadd.s32 %s160, 1
      %p164 = scmp.eq.s32.totalorder %s21, 1
      %p165 = scmp.ne.s32.totalorder %s160, %s162
      %p166 = scmp.eq.s32.totalorder %s21, 0
      %p167 = por %p165, %p166
      %p168 = scmp.ne.s32.totalorder %s160, %s162
      %p169 = scmp.eq.s32.totalorder %s26, 1
      %p170 = por %p168, %p169
      %p171 = scmp.ne.s32.totalorder %s162, %s163
      %p172 = scmp.eq.s32.totalorder %s26, 0
      %p173 = por %p171, %p172
      %p174 = scmp.ne.s32.totalorder %s162, %s163
      %p175 = scmp.eq.s32.totalorder %s27, 1
      %p176 = por %p174, %p175
      %p178 = scmp.ne.s32.totalorder %s163, %s177
      %p179 = scmp.eq.s32.totalorder %s27, 0
      %p180 = por %p178, %p179
      %s182 = sadd.s32 %s181, 1
      %p185 = scmp.eq.s32.totalorder %s21, 1
      %p186 = scmp.ne.s32.totalorder %s181, %s183
      %p187 = scmp.eq.s32.totalorder %s21, 0
      %p188 = por %p186, %p187
      %p189 = scmp.ne.s32.totalorder %s181, %s183
      %p190 = scmp.eq.s32.totalorder %s26, 1
      %p191 = por %p189, %p190
      %p192 = scmp.ne.s32.totalorder %s183, %s184
      %p193 = scmp.eq.s32.totalorder %s26, 0
      %p194 = por %p192, %p193
      %p195 = scmp.ne.s32.totalorder %s183, %s184
      %p196 = scmp.eq.s32.totalorder %s27, 1
      %p197 = por %p195, %p196
      %p199 = scmp.ne.s32.totalorder %s184, %s198
      %p200 = scmp.eq.s32.totalorder %s27, 0
      %p201 = por %p199, %p200
      %s203 = sadd.s32 %s202, 1
      %p206 = scmp.eq.s32.totalorder %s21, 1
      %p207 = scmp.ne.s32.totalorder %s202, %s204
      %p208 = scmp.eq.s32.totalorder %s21, 0
      %p209 = por %p207, %p208
      %p210 = scmp.ne.s32.totalorder %s202, %s204
      %p211 = scmp.eq.s32.totalorder %s26, 1
      %p212 = por %p210, %p211
      %p213 = scmp.ne.s32.totalorder %s204, %s205
      %p214 = scmp.eq.s32.totalorder %s26, 0
      %p215 = por %p213, %p214
      %p216 = scmp.ne.s32.totalorder %s204, %s205
      %p217 = scmp.eq.s32.totalorder %s27, 1
      %p218 = por %p216, %p217
      %p220 = scmp.ne.s32.totalorder %s205, %s219
      %p221 = scmp.eq.s32.totalorder %s27, 0
      %p222 = por %p220, %p221
      %s224 = sadd.s32 %s223, 1
      %p227 = scmp.eq.s32.totalorder %s21, 1
      %p228 = scmp.ne.s32.totalorder %s223, %s225
      %p229 = scmp.eq.s32.totalorder %s21, 0
      %p230 = por %p228, %p229
      %p231 = scmp.ne.s32.totalorder %s223, %s225
      %p232 = scmp.eq.s32.totalorder %s26, 1
      %p233 = por %p231, %p232
      %p234 = scmp.ne.s32.totalorder %s225, %s226
      %p235 = scmp.eq.s32.totalorder %s26, 0
      %p236 = por %p234, %p235
      %p237 = scmp.ne.s32.totalorder %s225, %s226
      %p238 = scmp.eq.s32.totalorder %s27, 1
      %p239 = por %p237, %p238
      %p241 = scmp.ne.s32.totalorder %s226, %s240
      %p242 = scmp.eq.s32.totalorder %s27, 0
      %p243 = por %p241, %p242
      %s245 = sadd.s32 %s244, 1
      %p248 = scmp.eq.s32.totalorder %s21, 1
      %p249 = scmp.ne.s32.totalorder %s244, %s246
      %p250 = scmp.eq.s32.totalorder %s21, 0
      %p251 = por %p249, %p250
      %p252 = scmp.ne.s32.totalorder %s244, %s246
      %p253 = scmp.eq.s32.totalorder %s26, 1
      %p254 = por %p252, %p253
      %p255 = scmp.ne.s32.totalorder %s246, %s247
      %p256 = scmp.eq.s32.totalorder %s26, 0
      %p257 = por %p255, %p256
      %p258 = scmp.ne.s32.totalorder %s246, %s247
      %p259 = scmp.eq.s32.totalorder %s27, 1
      %p260 = por %p258, %p259
      %p262 = scmp.ne.s32.totalorder %s247, %s261
      %p263 = scmp.eq.s32.totalorder %s27, 0
      %p264 = por %p262, %p263
      %s266 = sadd.s32 %s265, 1
      %p269 = scmp.eq.s32.totalorder %s21, 1
      %p270 = scmp.ne.s32.totalorder %s265, %s267
      %p271 = scmp.eq.s32.totalorder %s21, 0
      %p272 = por %p270, %p271
      %p273 = scmp.ne.s32.totalorder %s265, %s267
      %p274 = scmp.eq.s32.totalorder %s26, 1
      %p275 = por %p273, %p274
      %p276 = scmp.ne.s32.totalorder %s267, %s268
      %p277 = scmp.eq.s32.totalorder %s26, 0
      %p278 = por %p276, %p277
      %p279 = scmp.ne.s32.totalorder %s267, %s268
      %p280 = scmp.eq.s32.totalorder %s27, 1
      %p281 = por %p279, %p280
      %p283 = scmp.ne.s32.totalorder %s268, %s282
      %p284 = scmp.eq.s32.totalorder %s27, 0
      %p285 = por %p283, %p284
      %s286 = ssub.s32 %s21, %s28
      %p287 = scmp.eq.s32.totalorder %s286, 0
      %s289 = sadd.s32 %s288, 1
      %s290 = scalar_select %p287, %s288, %s289
      %p293 = pneg %p287
      %p294 = scmp.eq.s32.totalorder %s21, 1
      %p295 = por %p293, %p294
      %p296 = scmp.ne.s32.totalorder %s288, %s291
      %p297 = scmp.eq.s32.totalorder %s21, 0
      %p298 = por %p296, %p297
      %p299 = scmp.ne.s32.totalorder %s288, %s291
      %p300 = scmp.eq.s32.totalorder %s26, 1
      %p301 = por %p299, %p300
      %p302 = scmp.ne.s32.totalorder %s291, %s292
      %p303 = scmp.eq.s32.totalorder %s26, 0
      %p304 = por %p302, %p303
      %p305 = scmp.ne.s32.totalorder %s291, %s292
      %p306 = scmp.eq.s32.totalorder %s27, 1
      %p307 = por %p305, %p306
      %p309 = scmp.ne.s32.totalorder %s292, %s308
      %p310 = scmp.eq.s32.totalorder %s27, 0
      %p311 = por %p309, %p310
      %p312 = scmp.le.s32.totalorder 1, %s21
      %p313 = scmp.lt.s32.totalorder %s21, 3
      %p314 = pnand %p312, %p313
      %p315 = pneg %p314
      // Predicated region
      $region9: #{vision_transformer_forward.1} parent=5 // pred_check
        _
      $region10: #{vision_transformer_forward.1} parent=5 // pred_check_branch
        %317 = sbr.rel (%p314) target = $region12
      $region11: #{vision_transformer_forward.1} parent=5 // pred_region
        %s318 = ssub.s32 %s21, 1
        // Predicated region
        $region13: #{vision_transformer_forward.1} parent=11 // pred_check
          %p319 = pneg %p68
        $region14: #{vision_transformer_forward.1} parent=11 // pred_check_branch
          %321 = sbr.rel (%p319) target = $region16
        $region15: #{vision_transformer_forward.1} parent=11 // pred_region
          _
        $region16: #{vision_transformer_forward.1} parent=11 // pred_fallthru
          _
        // Predicated region
        $region17: #{vision_transformer_forward.1} parent=11 // pred_check
          %p322 = pneg %p89
        $region18: #{vision_transformer_forward.1} parent=11 // pred_check_branch
          %324 = sbr.rel (%p322) target = $region20
        $region19: #{vision_transformer_forward.1} parent=11 // pred_region
          _
        $region20: #{vision_transformer_forward.1} parent=11 // pred_fallthru
          _
        // Predicated region
        $region21: #{vision_transformer_forward.1} parent=11 // pred_check
          %p325 = pneg %p110
        $region22: #{vision_transformer_forward.1} parent=11 // pred_check_branch
          %327 = sbr.rel (%p325) target = $region24
        $region23: #{vision_transformer_forward.1} parent=11 // pred_region
          _
        $region24: #{vision_transformer_forward.1} parent=11 // pred_fallthru
          _
        // Predicated region
        $region25: #{vision_transformer_forward.1} parent=11 // pred_check
          %p328 = pneg %p131
        $region26: #{vision_transformer_forward.1} parent=11 // pred_check_branch
          %330 = sbr.rel (%p328) target = $region28
        $region27: #{vision_transformer_forward.1} parent=11 // pred_region
          _
        $region28: #{vision_transformer_forward.1} parent=11 // pred_fallthru
          _
        // Predicated region
        $region29: #{vision_transformer_forward.1} parent=11 // pred_check
          %p331 = pneg %p152
        $region30: #{vision_transformer_forward.1} parent=11 // pred_check_branch
          %333 = sbr.rel (%p331) target = $region32
        $region31: #{vision_transformer_forward.1} parent=11 // pred_region
          _
        $region32: #{vision_transformer_forward.1} parent=11 // pred_fallthru
          _
        // Predicated region
        $region33: #{vision_transformer_forward.1} parent=11 // pred_check
          %p334 = pneg %p173
        $region34: #{vision_transformer_forward.1} parent=11 // pred_check_branch
          %336 = sbr.rel (%p334) target = $region36
        $region35: #{vision_transformer_forward.1} parent=11 // pred_region
          _
        $region36: #{vision_transformer_forward.1} parent=11 // pred_fallthru
          _
        // Predicated region
        $region37: #{vision_transformer_forward.1} parent=11 // pred_check
          %p337 = pneg %p194
        $region38: #{vision_transformer_forward.1} parent=11 // pred_check_branch
          %339 = sbr.rel (%p337) target = $region40
        $region39: #{vision_transformer_forward.1} parent=11 // pred_region
          _
        $region40: #{vision_transformer_forward.1} parent=11 // pred_fallthru
          _
        // Predicated region
        $region41: #{vision_transformer_forward.1} parent=11 // pred_check
          %p340 = pneg %p215
        $region42: #{vision_transformer_forward.1} parent=11 // pred_check_branch
          %342 = sbr.rel (%p340) target = $region44
        $region43: #{vision_transformer_forward.1} parent=11 // pred_region
          _
        $region44: #{vision_transformer_forward.1} parent=11 // pred_fallthru
          _
        // Predicated region
        $region45: #{vision_transformer_forward.1} parent=11 // pred_check
          %p343 = pneg %p236
        $region46: #{vision_transformer_forward.1} parent=11 // pred_check_branch
          %345 = sbr.rel (%p343) target = $region48
        $region47: #{vision_transformer_forward.1} parent=11 // pred_region
          _
        $region48: #{vision_transformer_forward.1} parent=11 // pred_fallthru
          _
        // Predicated region
        $region49: #{vision_transformer_forward.1} parent=11 // pred_check
          %p346 = pneg %p257
        $region50: #{vision_transformer_forward.1} parent=11 // pred_check_branch
          %348 = sbr.rel (%p346) target = $region52
        $region51: #{vision_transformer_forward.1} parent=11 // pred_region
          _
        $region52: #{vision_transformer_forward.1} parent=11 // pred_fallthru
          _
        // Predicated region
        $region53: #{vision_transformer_forward.1} parent=11 // pred_check
          %p349 = pneg %p278
        $region54: #{vision_transformer_forward.1} parent=11 // pred_check_branch
          %351 = sbr.rel (%p349) target = $region56
        $region55: #{vision_transformer_forward.1} parent=11 // pred_region
          _
        $region56: #{vision_transformer_forward.1} parent=11 // pred_fallthru
          _
      $region12: #{vision_transformer_forward.1} parent=5 // pred_fallthru
        _
      %p352 = scmp.lt.s32.totalorder %s21, 2
      // Predicated region
      $region57: #{vision_transformer_forward.1} parent=5 // pred_check
        %p353 = pneg %p352
      $region58: #{vision_transformer_forward.1} parent=5 // pred_check_branch
        %355 = sbr.rel (%p353) target = $region60
      $region59: #{vision_transformer_forward.1} parent=5 // pred_region
        // Predicated region
        $region61: #{vision_transformer_forward.1} parent=59 // pred_check
          %p356 = pneg %p41
        $region62: #{vision_transformer_forward.1} parent=59 // pred_check_branch
          %358 = sbr.rel (%p356) target = $region64
        $region63: #{vision_transformer_forward.1} parent=59 // pred_region
          %p359 = scmp.lt.s32.totalorder %s21, 1
          %s360 = scalar_select %p359, %s21, 1
          %s361 = smul.addr %s360, 2
          %s362 = smul.addr %s361, 8
          %s363 = scalar_lea.vmem %s0, %s362
        $region64: #{vision_transformer_forward.1} parent=59 // pred_fallthru
          _
      $region60: #{vision_transformer_forward.1} parent=5 // pred_fallthru
        _
      %p364 = scmp.le.s32.totalorder 1, %s21
      %p365 = scmp.lt.s32.totalorder %s21, 3
      %p366 = pnand %p364, %p365
      %p367 = pneg %p366
      // Predicated region
      $region65: #{vision_transformer_forward.1} parent=5 // pred_check
        _
      $region66: #{vision_transformer_forward.1} parent=5 // pred_check_branch
        %369 = sbr.rel (%p366) target = $region68
      $region67: #{vision_transformer_forward.1} parent=5 // pred_region
        %s370 = ssub.s32 %s21, 1
        %p371 = scmp.lt.s32.totalorder %s26, 1
        %s372 = scalar_select %p371, %s26, 1
        %s373 = smul.addr %s372, 2
        %s374 = smul.addr %s373, 8
        %s375 = scalar_lea.vmem %s0, %s374
        %p376 = pneg %p47
        %p377 = pneg %p44
        %p378 = pneg %p68
        %p379 = pneg %p65
        %p380 = pneg %p89
        %p381 = pneg %p86
        %p382 = pneg %p110
        %p383 = pneg %p107
        %p384 = pneg %p131
        %p385 = pneg %p128
        %p386 = pneg %p152
        %p387 = pneg %p149
        %p388 = pneg %p173
        %p389 = pneg %p170
        %p390 = pneg %p194
        %p391 = pneg %p191
        %p392 = pneg %p215
        %p393 = pneg %p212
        %p394 = pneg %p236
        %p395 = pneg %p233
        %p396 = pneg %p257
        %p397 = pneg %p254
        %p398 = pneg %p278
        %p399 = pneg %p275
        %p400 = pneg %p304
        %p401 = pneg %p301
        %s402 = sand.u32 %s291, 1
        %s403 = scalar_lea.sflag [#allocation3], %s402
        %s404 = sand.u32 %s291, 1
        %s405 = scalar_lea.vmem [#allocation2], %s404
        %p406 = scmp.lt.s32.totalorder %s26, 1
        %s407 = scalar_select %p406, %s26, 1
        %s408 = smul.addr %s407, 2
        %s409 = smul.addr %s408, 8
        %s410 = scalar_lea.vmem %s0, %s409
        %v412 = vld [vmem:[%s410] sm:$0xff]
        %v413 = vld [vmem:[%s410 + $0x8] sm:$0xff]
        %v414 = vld [vmem:[%s1] sm:$0xf]
        %v415 = vld [vmem:[%s1 + $0x4] sm:$0xf]
        %v416 = vld [vmem:[%s1 + $0x8] sm:$0xf]
        %v417 = vld [vmem:[%s1 + $0xc] sm:$0xf]
        %v418 = vld [vmem:[%s1 + $0x10] sm:$0xf]
        %v419 = vld [vmem:[%s1 + $0x14] sm:$0xf]
        %v420 = vld [vmem:[%s1 + $0x18] sm:$0xf]
        %v421 = vld [vmem:[%s1 + $0x1c] sm:$0xf]
        %v422 = vpack.c.bf16 %v413, %v412
        %v423 = vld [vmem:[%s2] sm:$0x1]
        %v425 = vlaneseq
        %v426 = vshrl.u32 %v425, 7
        %v427 = vsub.s32 0, %v426
        %v428 = vrot.slane %v423, %v427
        %v438 = vunpack.c.l.b16 %v414
        %v439 = vunpack.c.l.b16 %v415
        %v440 = vunpack.c.l.b16 %v416
        %v441 = vunpack.c.l.b16 %v417
        %v442 = vunpack.c.l.b16 %v418
        %v443 = vunpack.c.l.b16 %v419
        %v444 = vunpack.c.l.b16 %v420
        %v445 = vunpack.c.l.b16 %v421
        %v446 = vpack.c.b16 %v439, %v438
        %v447 = vpack.c.b16 %v441, %v440
        %v448 = vpack.c.b16 %v443, %v442
        %v449 = vpack.c.b16 %v445, %v444
        %vm454 = vcmask 523264
        %v456 = vsel %vm454, %v422, 0
        %458 = vmatprep.subr.bf16.mxu0 0
        %459 = vmatpush1.bf16.msra.mxu0 %v446
        %460 = vmatprep.subr.bf16.mxu0 0
        %461 = vmatpush1.bf16.msra.mxu0 %v447
        %462 = vmatprep.subr.bf16.mxu0 0
        %463 = vmatpush1.bf16.msra.mxu0 %v448
        %464 = vmatprep.subr.bf16.mxu0 0
        %465 = vmatpush1.bf16.msra.mxu0 %v449
        %466 = vmatprep.subr.bf16.mxu0 0
        %467 = vmatpush1.bf16.msra.mxu0 0
        %468 = vmatprep.subr.bf16.mxu0 0
        %469 = vmatpush1.bf16.msra.mxu0 0
        %470 = vmatprep.subr.bf16.mxu0 0
        %471 = vmatpush1.bf16.msra.mxu0 0
        %472 = vmatprep.subr.bf16.mxu0 0
        %473 = vmatpush1.bf16.msra.mxu0 0
        %474 = vmatprep.subr.bf16.mxu0 0
        %475 = vmatpush1.bf16.msra.mxu0 0
        %476 = vmatprep.subr.bf16.mxu0 0
        %477 = vmatpush1.bf16.msra.mxu0 0
        %478 = vmatprep.subr.bf16.mxu0 0
        %479 = vmatpush1.bf16.msra.mxu0 0
        %480 = vmatprep.subr.bf16.mxu0 0
        %481 = vmatpush1.bf16.msra.mxu0 0
        %482 = vmatprep.subr.bf16.mxu0 0
        %483 = vmatpush1.bf16.msra.mxu0 0
        %484 = vmatprep.subr.bf16.mxu0 0
        %485 = vmatpush1.bf16.msra.mxu0 0
        %486 = vmatprep.subr.bf16.mxu0 0
        %487 = vmatpush1.bf16.msra.mxu0 0
        %488 = vmatprep.subr.bf16.mxu0 0
        %489 = vmatpush1.bf16.msra.mxu0 0
        %490 = vmatprep.mubr.bf16.mxu0 0
        %491 = vmatmul.mubr.bf16.gmra.mrb[0].mxu0 %v456
        %v492 = vpop.f32.mrb[0].mxu0
        %v493 = vadd.f32 %v428, %v492
        %v494 = vpop.f32.mrb[0].mxu0
        %v495 = vpop.f32.mrb[0].mxu0
        %v496 = vadd.f32 %v428, %v495
        %v497 = vpop.f32.mrb[0].mxu0
        %498 = vdwg.mxu0
        %v499 = vld [vmem:[%s3] sm:$0xff]
        %v500 = vld [vmem:[%s3 + $0x8] sm:$0xff]
        %v501 = vadd.f32 %v493, %v499
        %v502 = vadd.f32 %v496, %v500
        loop: start=0, step=1, limit=2
        $region69: #{vision_transformer_forward.1} parent=67 // loop_pre_header
          _
        $region70: #{vision_transformer_forward.1} parent=67 // loop_header
          %s504 = sphi 0, %s508
          %p505 = scmp.ge.s32.totalorder %s504, 2
          %v509 = vphi %v501, %v1219
          %v510 = vphi %v502, %v1220
        $region71: #{vision_transformer_forward.1} parent=67 // loop_header_branch
          %507 = sbr.rel (%p505) target = $region75
        $region72: #{vision_transformer_forward.1} parent=67 // loop_body
          %s511 = smul.u32 %s504, 4
          %s512 = smul.addr %s511, 4
          %s513 = scalar_lea.vmem %s4, %s512
          %v514 = vld [vmem:[%s513] sm:$0xf]
          %v515 = vld [vmem:[%s513 + $0x4] sm:$0xf]
          %v516 = vld [vmem:[%s513 + $0x8] sm:$0xf]
          %v517 = vld [vmem:[%s513 + $0xc] sm:$0xf]
          %v518 = vpack.c.bf16 %v510, %v509
          %v523 = vunpack.c.l.b16 %v514
          %v524 = vunpack.c.l.b16 %v515
          %v525 = vunpack.c.l.b16 %v516
          %v526 = vunpack.c.l.b16 %v517
          %v527 = vpack.c.b16 %v524, %v523
          %v528 = vpack.c.b16 %v526, %v525
          %vm531 = vcmask 261120
          %v533 = vsel %vm531, %v518, 0
          %535 = vmatprep.subr.bf16.mxu0 0
          %536 = vmatpush1.bf16.msra.mxu0 %v527
          %537 = vmatprep.subr.bf16.mxu0 0
          %538 = vmatpush1.bf16.msra.mxu0 %v528
          %539 = vmatprep.subr.bf16.mxu0 0
          %540 = vmatpush1.bf16.msra.mxu0 0
          %541 = vmatprep.subr.bf16.mxu0 0
          %542 = vmatpush1.bf16.msra.mxu0 0
          %543 = vmatprep.subr.bf16.mxu0 0
          %544 = vmatpush1.bf16.msra.mxu0 0
          %545 = vmatprep.subr.bf16.mxu0 0
          %546 = vmatpush1.bf16.msra.mxu0 0
          %547 = vmatprep.subr.bf16.mxu0 0
          %548 = vmatpush1.bf16.msra.mxu0 0
          %549 = vmatprep.subr.bf16.mxu0 0
          %550 = vmatpush1.bf16.msra.mxu0 0
          %551 = vmatprep.subr.bf16.mxu0 0
          %552 = vmatpush1.bf16.msra.mxu0 0
          %553 = vmatprep.subr.bf16.mxu0 0
          %554 = vmatpush1.bf16.msra.mxu0 0
          %555 = vmatprep.subr.bf16.mxu0 0
          %556 = vmatpush1.bf16.msra.mxu0 0
          %557 = vmatprep.subr.bf16.mxu0 0
          %558 = vmatpush1.bf16.msra.mxu0 0
          %559 = vmatprep.subr.bf16.mxu0 0
          %560 = vmatpush1.bf16.msra.mxu0 0
          %561 = vmatprep.subr.bf16.mxu0 0
          %562 = vmatpush1.bf16.msra.mxu0 0
          %563 = vmatprep.subr.bf16.mxu0 0
          %564 = vmatpush1.bf16.msra.mxu0 0
          %565 = vmatprep.subr.bf16.mxu0 0
          %566 = vmatpush1.bf16.msra.mxu0 0
          %567 = vmatprep.mubr.bf16.mxu0 0
          %568 = vmatmul.mubr.bf16.gmra.mrb[0].mxu0 %v533
          %v569 = vpop.f32.mrb[0].mxu0
          %v570 = vadd.f32 0.0, %v569
          %v571 = vpop.f32.mrb[0].mxu0
          %v572 = vpop.f32.mrb[0].mxu0
          %v573 = vadd.f32 0.0, %v572
          %v574 = vpop.f32.mrb[0].mxu0
          %575 = vdwg.mxu0
          %v576 = vpack.c.bf16 %v573, %v570
          %578 = vrot.lane.b32.xlu0 %v576, 96
          %v579 = vpop.permute.xlu0 %578
          %vm580 = vcmask 64512
          %v582 = vsel %vm580, %v576, 0
          %v585 = vsel %vm580, %v579, 0
          %587 = vmatprep.subr.bf16.mxu0 0
          %588 = vmatpush1.bf16.xpose.msra.mxu0 %v585
          %589 = vmatprep.subr.bf16.mxu0 0
          %590 = vmatpush1.bf16.xpose.msra.mxu0 0
          %591 = vmatprep.subr.bf16.mxu0 0
          %592 = vmatpush1.bf16.xpose.msra.mxu0 0
          %593 = vmatprep.subr.bf16.mxu0 0
          %594 = vmatpush1.bf16.xpose.msra.mxu0 0
          %595 = vmatprep.subr.bf16.mxu0 0
          %596 = vmatpush1.bf16.xpose.msra.mxu0 0
          %597 = vmatprep.subr.bf16.mxu0 0
          %598 = vmatpush1.bf16.xpose.msra.mxu0 0
          %599 = vmatprep.subr.bf16.mxu0 0
          %600 = vmatpush1.bf16.xpose.msra.mxu0 0
          %601 = vmatprep.subr.bf16.mxu0 0
          %602 = vmatpush1.bf16.xpose.msra.mxu0 0
          %603 = vmatprep.subr.bf16.mxu0 0
          %604 = vmatpush1.bf16.xpose.msra.mxu0 0
          %605 = vmatprep.subr.bf16.mxu0 0
          %606 = vmatpush1.bf16.xpose.msra.mxu0 0
          %607 = vmatprep.subr.bf16.mxu0 0
          %608 = vmatpush1.bf16.xpose.msra.mxu0 0
          %609 = vmatprep.subr.bf16.mxu0 0
          %610 = vmatpush1.bf16.xpose.msra.mxu0 0
          %611 = vmatprep.subr.bf16.mxu0 0
          %612 = vmatpush1.bf16.xpose.msra.mxu0 0
          %613 = vmatprep.subr.bf16.mxu0 0
          %614 = vmatpush1.bf16.xpose.msra.mxu0 0
          %615 = vmatprep.subr.bf16.mxu0 0
          %616 = vmatpush1.bf16.xpose.msra.mxu0 0
          %617 = vmatprep.subr.bf16.mxu0 0
          %618 = vmatpush1.bf16.xpose.msra.mxu0 0
          %619 = vmatprep.mubr.bf16.mxu0 0
          %620 = vmatmul.mubr.bf16.gmra.mrb[0].mxu0 %v582
          %v621 = vpop.f32.mrb[0].mxu0
          %v622 = vadd.f32 0.0, %v621
          %v623 = vpop.f32.mrb[0].mxu0
          %v624 = vpop.f32.mrb[0].mxu0
          %v625 = vadd.f32 0.0, %v624
          %v626 = vpop.f32.mrb[0].mxu0
          %627 = vdwg.mxu0
          %v628 = vmul.f32 %v622, 0.35355338
          %v629 = vmul.f32 %v625, 0.35355338
          %vm630 = vcmask 130048
          %v631 = vsel %vm630, %v628, -inf
          %632 = vmax.xlane.f32.xlu0 %v631
          %v633 = vpop.xlane.xlu0 %632
          %v634 = vsel %vm630, %v629, -inf
          %635 = vmax.xlane.f32.xlu0 %v634
          %v636 = vpop.xlane.xlu0 %635
          %v637 = vsub.f32 %v628, %v633
          %v638 = vsub.f32 %v629, %v636
          %v639 = vmul.f32 %v637, 1.442695
          %v640 = vpow.pop %v639
          %v641 = vmul.f32 %v638, 1.442695
          %v642 = vpow.pop %v641
          %v643 = vsel %vm630, %v640, 0.0
          %644 = vadd.xlane.f32.xlu0 %v643
          %v645 = vpop.xlane.xlu0 %644
          %v646 = vsel %vm630, %v642, 0.0
          %647 = vadd.xlane.f32.xlu0 %v646
          %v648 = vpop.xlane.xlu0 %647
          %v649 = vrcp.pop %v645
          %v650 = vrcp.pop %v648
          %v651 = vmul.f32 %v640, %v649
          %v652 = vmul.f32 %v642, %v650
          %v653 = vpack.c.bf16 %v652, %v651
          %654 = vrot.lane.b32.xlu0 %v576, 64
          %v655 = vpop.permute.xlu0 %654
          %v658 = vsel %vm630, %v653, 0
          %660 = vmatprep.subr.bf16.mxu0 0
          %661 = vmatpush1.bf16.msra.mxu0 %v655
          %662 = vmatprep.subr.bf16.mxu0 0
          %663 = vmatpush1.bf16.msra.mxu0 0
          %664 = vmatprep.subr.bf16.mxu0 0
          %665 = vmatpush1.bf16.msra.mxu0 0
          %666 = vmatprep.subr.bf16.mxu0 0
          %667 = vmatpush1.bf16.msra.mxu0 0
          %668 = vmatprep.subr.bf16.mxu0 0
          %669 = vmatpush1.bf16.msra.mxu0 0
          %670 = vmatprep.subr.bf16.mxu0 0
          %671 = vmatpush1.bf16.msra.mxu0 0
          %672 = vmatprep.subr.bf16.mxu0 0
          %673 = vmatpush1.bf16.msra.mxu0 0
          %674 = vmatprep.subr.bf16.mxu0 0
          %675 = vmatpush1.bf16.msra.mxu0 0
          %676 = vmatprep.subr.bf16.mxu0 0
          %677 = vmatpush1.bf16.msra.mxu0 0
          %678 = vmatprep.subr.bf16.mxu0 0
          %679 = vmatpush1.bf16.msra.mxu0 0
          %680 = vmatprep.subr.bf16.mxu0 0
          %681 = vmatpush1.bf16.msra.mxu0 0
          %682 = vmatprep.subr.bf16.mxu0 0
          %683 = vmatpush1.bf16.msra.mxu0 0
          %684 = vmatprep.subr.bf16.mxu0 0
          %685 = vmatpush1.bf16.msra.mxu0 0
          %686 = vmatprep.subr.bf16.mxu0 0
          %687 = vmatpush1.bf16.msra.mxu0 0
          %688 = vmatprep.subr.bf16.mxu0 0
          %689 = vmatpush1.bf16.msra.mxu0 0
          %690 = vmatprep.subr.bf16.mxu0 0
          %691 = vmatpush1.bf16.msra.mxu0 0
          %692 = vmatprep.mubr.bf16.mxu0 0
          %693 = vmatmul.mubr.bf16.gmra.mrb[0].mxu0 %v658
          %v694 = vpop.f32.mrb[0].mxu0
          %v695 = vadd.f32 0.0, %v694
          %v696 = vpop.f32.mrb[0].mxu0
          %v697 = vpop.f32.mrb[0].mxu0
          %v698 = vadd.f32 0.0, %v697
          %v699 = vpop.f32.mrb[0].mxu0
          %700 = vdwg.mxu0
          %701 = vrot.lane.b32.xlu0 %v576, 120
          %v702 = vpop.permute.xlu0 %701
          %703 = vrot.lane.b32.xlu0 %v576, 88
          %v704 = vpop.permute.xlu0 %703
          %v706 = vsel %vm580, %v702, 0
          %v709 = vsel %vm580, %v704, 0
          %711 = vmatprep.subr.bf16.mxu0 0
          %712 = vmatpush1.bf16.xpose.msra.mxu0 %v709
          %713 = vmatprep.subr.bf16.mxu0 0
          %714 = vmatpush1.bf16.xpose.msra.mxu0 0
          %715 = vmatprep.subr.bf16.mxu0 0
          %716 = vmatpush1.bf16.xpose.msra.mxu0 0
          %717 = vmatprep.subr.bf16.mxu0 0
          %718 = vmatpush1.bf16.xpose.msra.mxu0 0
          %719 = vmatprep.subr.bf16.mxu0 0
          %720 = vmatpush1.bf16.xpose.msra.mxu0 0
          %721 = vmatprep.subr.bf16.mxu0 0
          %722 = vmatpush1.bf16.xpose.msra.mxu0 0
          %723 = vmatprep.subr.bf16.mxu0 0
          %724 = vmatpush1.bf16.xpose.msra.mxu0 0
          %725 = vmatprep.subr.bf16.mxu0 0
          %726 = vmatpush1.bf16.xpose.msra.mxu0 0
          %727 = vmatprep.subr.bf16.mxu0 0
          %728 = vmatpush1.bf16.xpose.msra.mxu0 0
          %729 = vmatprep.subr.bf16.mxu0 0
          %730 = vmatpush1.bf16.xpose.msra.mxu0 0
          %731 = vmatprep.subr.bf16.mxu0 0
          %732 = vmatpush1.bf16.xpose.msra.mxu0 0
          %733 = vmatprep.subr.bf16.mxu0 0
          %734 = vmatpush1.bf16.xpose.msra.mxu0 0
          %735 = vmatprep.subr.bf16.mxu0 0
          %736 = vmatpush1.bf16.xpose.msra.mxu0 0
          %737 = vmatprep.subr.bf16.mxu0 0
          %738 = vmatpush1.bf16.xpose.msra.mxu0 0
          %739 = vmatprep.subr.bf16.mxu0 0
          %740 = vmatpush1.bf16.xpose.msra.mxu0 0
          %741 = vmatprep.subr.bf16.mxu0 0
          %742 = vmatpush1.bf16.xpose.msra.mxu0 0
          %743 = vmatprep.mubr.bf16.mxu0 0
          %744 = vmatmul.mubr.bf16.gmra.mrb[0].mxu0 %v706
          %v745 = vpop.f32.mrb[0].mxu0
          %v746 = vadd.f32 0.0, %v745
          %v747 = vpop.f32.mrb[0].mxu0
          %v748 = vpop.f32.mrb[0].mxu0
          %v749 = vadd.f32 0.0, %v748
          %v750 = vpop.f32.mrb[0].mxu0
          %751 = vdwg.mxu0
          %v752 = vmul.f32 %v746, 0.35355338
          %v753 = vmul.f32 %v749, 0.35355338
          %v754 = vsel %vm630, %v752, -inf
          %755 = vmax.xlane.f32.xlu0 %v754
          %v756 = vpop.xlane.xlu0 %755
          %v757 = vsel %vm630, %v753, -inf
          %758 = vmax.xlane.f32.xlu0 %v757
          %v759 = vpop.xlane.xlu0 %758
          %v760 = vsub.f32 %v752, %v756
          %v761 = vsub.f32 %v753, %v759
          %v762 = vmul.f32 %v760, 1.442695
          %v763 = vpow.pop %v762
          %v764 = vmul.f32 %v761, 1.442695
          %v765 = vpow.pop %v764
          %v766 = vsel %vm630, %v763, 0.0
          %767 = vadd.xlane.f32.xlu0 %v766
          %v768 = vpop.xlane.xlu0 %767
          %v769 = vsel %vm630, %v765, 0.0
          %770 = vadd.xlane.f32.xlu0 %v769
          %v771 = vpop.xlane.xlu0 %770
          %v772 = vrcp.pop %v768
          %v773 = vrcp.pop %v771
          %v774 = vmul.f32 %v763, %v772
          %v775 = vmul.f32 %v765, %v773
          %v776 = vpack.c.bf16 %v775, %v774
          %777 = vrot.lane.b32.xlu0 %v576, 56
          %v778 = vpop.permute.xlu0 %777
          %v781 = vsel %vm630, %v776, 0
          %783 = vmatprep.subr.bf16.mxu0 0
          %784 = vmatpush1.bf16.msra.mxu0 %v778
          %785 = vmatprep.subr.bf16.mxu0 0
          %786 = vmatpush1.bf16.msra.mxu0 0
          %787 = vmatprep.subr.bf16.mxu0 0
          %788 = vmatpush1.bf16.msra.mxu0 0
          %789 = vmatprep.subr.bf16.mxu0 0
          %790 = vmatpush1.bf16.msra.mxu0 0
          %791 = vmatprep.subr.bf16.mxu0 0
          %792 = vmatpush1.bf16.msra.mxu0 0
          %793 = vmatprep.subr.bf16.mxu0 0
          %794 = vmatpush1.bf16.msra.mxu0 0
          %795 = vmatprep.subr.bf16.mxu0 0
          %796 = vmatpush1.bf16.msra.mxu0 0
          %797 = vmatprep.subr.bf16.mxu0 0
          %798 = vmatpush1.bf16.msra.mxu0 0
          %799 = vmatprep.subr.bf16.mxu0 0
          %800 = vmatpush1.bf16.msra.mxu0 0
          %801 = vmatprep.subr.bf16.mxu0 0
          %802 = vmatpush1.bf16.msra.mxu0 0
          %803 = vmatprep.subr.bf16.mxu0 0
          %804 = vmatpush1.bf16.msra.mxu0 0
          %805 = vmatprep.subr.bf16.mxu0 0
          %806 = vmatpush1.bf16.msra.mxu0 0
          %807 = vmatprep.subr.bf16.mxu0 0
          %808 = vmatpush1.bf16.msra.mxu0 0
          %809 = vmatprep.subr.bf16.mxu0 0
          %810 = vmatpush1.bf16.msra.mxu0 0
          %811 = vmatprep.subr.bf16.mxu0 0
          %812 = vmatpush1.bf16.msra.mxu0 0
          %813 = vmatprep.subr.bf16.mxu0 0
          %814 = vmatpush1.bf16.msra.mxu0 0
          %815 = vmatprep.mubr.bf16.mxu0 0
          %816 = vmatmul.mubr.bf16.gmra.mrb[0].mxu0 %v781
          %v817 = vpop.f32.mrb[0].mxu0
          %v818 = vadd.f32 0.0, %v817
          %v819 = vpop.f32.mrb[0].mxu0
          %v820 = vpop.f32.mrb[0].mxu0
          %v821 = vadd.f32 0.0, %v820
          %v822 = vpop.f32.mrb[0].mxu0
          %823 = vdwg.mxu0
          %824 = vrot.lane.b32.xlu0 %v576, 112
          %v825 = vpop.permute.xlu0 %824
          %826 = vrot.lane.b32.xlu0 %v576, 80
          %v827 = vpop.permute.xlu0 %826
          %v829 = vsel %vm580, %v825, 0
          %v832 = vsel %vm580, %v827, 0
          %834 = vmatprep.subr.bf16.mxu0 0
          %835 = vmatpush1.bf16.xpose.msra.mxu0 %v832
          %836 = vmatprep.subr.bf16.mxu0 0
          %837 = vmatpush1.bf16.xpose.msra.mxu0 0
          %838 = vmatprep.subr.bf16.mxu0 0
          %839 = vmatpush1.bf16.xpose.msra.mxu0 0
          %840 = vmatprep.subr.bf16.mxu0 0
          %841 = vmatpush1.bf16.xpose.msra.mxu0 0
          %842 = vmatprep.subr.bf16.mxu0 0
          %843 = vmatpush1.bf16.xpose.msra.mxu0 0
          %844 = vmatprep.subr.bf16.mxu0 0
          %845 = vmatpush1.bf16.xpose.msra.mxu0 0
          %846 = vmatprep.subr.bf16.mxu0 0
          %847 = vmatpush1.bf16.xpose.msra.mxu0 0
          %848 = vmatprep.subr.bf16.mxu0 0
          %849 = vmatpush1.bf16.xpose.msra.mxu0 0
          %850 = vmatprep.subr.bf16.mxu0 0
          %851 = vmatpush1.bf16.xpose.msra.mxu0 0
          %852 = vmatprep.subr.bf16.mxu0 0
          %853 = vmatpush1.bf16.xpose.msra.mxu0 0
          %854 = vmatprep.subr.bf16.mxu0 0
          %855 = vmatpush1.bf16.xpose.msra.mxu0 0
          %856 = vmatprep.subr.bf16.mxu0 0
          %857 = vmatpush1.bf16.xpose.msra.mxu0 0
          %858 = vmatprep.subr.bf16.mxu0 0
          %859 = vmatpush1.bf16.xpose.msra.mxu0 0
          %860 = vmatprep.subr.bf16.mxu0 0
          %861 = vmatpush1.bf16.xpose.msra.mxu0 0
          %862 = vmatprep.subr.bf16.mxu0 0
          %863 = vmatpush1.bf16.xpose.msra.mxu0 0
          %864 = vmatprep.subr.bf16.mxu0 0
          %865 = vmatpush1.bf16.xpose.msra.mxu0 0
          %866 = vmatprep.mubr.bf16.mxu0 0
          %867 = vmatmul.mubr.bf16.gmra.mrb[0].mxu0 %v829
          %v868 = vpop.f32.mrb[0].mxu0
          %v869 = vadd.f32 0.0, %v868
          %v870 = vpop.f32.mrb[0].mxu0
          %v871 = vpop.f32.mrb[0].mxu0
          %v872 = vadd.f32 0.0, %v871
          %v873 = vpop.f32.mrb[0].mxu0
          %874 = vdwg.mxu0
          %v875 = vmul.f32 %v869, 0.35355338
          %v876 = vmul.f32 %v872, 0.35355338
          %v877 = vsel %vm630, %v875, -inf
          %878 = vmax.xlane.f32.xlu0 %v877
          %v879 = vpop.xlane.xlu0 %878
          %v880 = vsel %vm630, %v876, -inf
          %881 = vmax.xlane.f32.xlu0 %v880
          %v882 = vpop.xlane.xlu0 %881
          %v883 = vsub.f32 %v875, %v879
          %v884 = vsub.f32 %v876, %v882
          %v885 = vmul.f32 %v883, 1.442695
          %v886 = vpow.pop %v885
          %v887 = vmul.f32 %v884, 1.442695
          %v888 = vpow.pop %v887
          %v889 = vsel %vm630, %v886, 0.0
          %890 = vadd.xlane.f32.xlu0 %v889
          %v891 = vpop.xlane.xlu0 %890
          %v892 = vsel %vm630, %v888, 0.0
          %893 = vadd.xlane.f32.xlu0 %v892
          %v894 = vpop.xlane.xlu0 %893
          %v895 = vrcp.pop %v891
          %v896 = vrcp.pop %v894
          %v897 = vmul.f32 %v886, %v895
          %v898 = vmul.f32 %v888, %v896
          %v899 = vpack.c.bf16 %v898, %v897
          %900 = vrot.lane.b32.xlu0 %v576, 48
          %v901 = vpop.permute.xlu0 %900
          %v904 = vsel %vm630, %v899, 0
          %906 = vmatprep.subr.bf16.mxu0 0
          %907 = vmatpush1.bf16.msra.mxu0 %v901
          %908 = vmatprep.subr.bf16.mxu0 0
          %909 = vmatpush1.bf16.msra.mxu0 0
          %910 = vmatprep.subr.bf16.mxu0 0
          %911 = vmatpush1.bf16.msra.mxu0 0
          %912 = vmatprep.subr.bf16.mxu0 0
          %913 = vmatpush1.bf16.msra.mxu0 0
          %914 = vmatprep.subr.bf16.mxu0 0
          %915 = vmatpush1.bf16.msra.mxu0 0
          %916 = vmatprep.subr.bf16.mxu0 0
          %917 = vmatpush1.bf16.msra.mxu0 0
          %918 = vmatprep.subr.bf16.mxu0 0
          %919 = vmatpush1.bf16.msra.mxu0 0
          %920 = vmatprep.subr.bf16.mxu0 0
          %921 = vmatpush1.bf16.msra.mxu0 0
          %922 = vmatprep.subr.bf16.mxu0 0
          %923 = vmatpush1.bf16.msra.mxu0 0
          %924 = vmatprep.subr.bf16.mxu0 0
          %925 = vmatpush1.bf16.msra.mxu0 0
          %926 = vmatprep.subr.bf16.mxu0 0
          %927 = vmatpush1.bf16.msra.mxu0 0
          %928 = vmatprep.subr.bf16.mxu0 0
          %929 = vmatpush1.bf16.msra.mxu0 0
          %930 = vmatprep.subr.bf16.mxu0 0
          %931 = vmatpush1.bf16.msra.mxu0 0
          %932 = vmatprep.subr.bf16.mxu0 0
          %933 = vmatpush1.bf16.msra.mxu0 0
          %934 = vmatprep.subr.bf16.mxu0 0
          %935 = vmatpush1.bf16.msra.mxu0 0
          %936 = vmatprep.subr.bf16.mxu0 0
          %937 = vmatpush1.bf16.msra.mxu0 0
          %938 = vmatprep.mubr.bf16.mxu0 0
          %939 = vmatmul.mubr.bf16.gmra.mrb[0].mxu0 %v904
          %v940 = vpop.f32.mrb[0].mxu0
          %v941 = vadd.f32 0.0, %v940
          %v942 = vpop.f32.mrb[0].mxu0
          %v943 = vpop.f32.mrb[0].mxu0
          %v944 = vadd.f32 0.0, %v943
          %v945 = vpop.f32.mrb[0].mxu0
          %946 = vdwg.mxu0
          %947 = vrot.lane.b32.xlu0 %v576, 104
          %v948 = vpop.permute.xlu0 %947
          %949 = vrot.lane.b32.xlu0 %v576, 72
          %v950 = vpop.permute.xlu0 %949
          %v952 = vsel %vm580, %v948, 0
          %v955 = vsel %vm580, %v950, 0
          %957 = vmatprep.subr.bf16.mxu0 0
          %958 = vmatpush1.bf16.xpose.msra.mxu0 %v955
          %959 = vmatprep.subr.bf16.mxu0 0
          %960 = vmatpush1.bf16.xpose.msra.mxu0 0
          %961 = vmatprep.subr.bf16.mxu0 0
          %962 = vmatpush1.bf16.xpose.msra.mxu0 0
          %963 = vmatprep.subr.bf16.mxu0 0
          %964 = vmatpush1.bf16.xpose.msra.mxu0 0
          %965 = vmatprep.subr.bf16.mxu0 0
          %966 = vmatpush1.bf16.xpose.msra.mxu0 0
          %967 = vmatprep.subr.bf16.mxu0 0
          %968 = vmatpush1.bf16.xpose.msra.mxu0 0
          %969 = vmatprep.subr.bf16.mxu0 0
          %970 = vmatpush1.bf16.xpose.msra.mxu0 0
          %971 = vmatprep.subr.bf16.mxu0 0
          %972 = vmatpush1.bf16.xpose.msra.mxu0 0
          %973 = vmatprep.subr.bf16.mxu0 0
          %974 = vmatpush1.bf16.xpose.msra.mxu0 0
          %975 = vmatprep.subr.bf16.mxu0 0
          %976 = vmatpush1.bf16.xpose.msra.mxu0 0
          %977 = vmatprep.subr.bf16.mxu0 0
          %978 = vmatpush1.bf16.xpose.msra.mxu0 0
          %979 = vmatprep.subr.bf16.mxu0 0
          %980 = vmatpush1.bf16.xpose.msra.mxu0 0
          %981 = vmatprep.subr.bf16.mxu0 0
          %982 = vmatpush1.bf16.xpose.msra.mxu0 0
          %983 = vmatprep.subr.bf16.mxu0 0
          %984 = vmatpush1.bf16.xpose.msra.mxu0 0
          %985 = vmatprep.subr.bf16.mxu0 0
          %986 = vmatpush1.bf16.xpose.msra.mxu0 0
          %987 = vmatprep.subr.bf16.mxu0 0
          %988 = vmatpush1.bf16.xpose.msra.mxu0 0
          %989 = vmatprep.mubr.bf16.mxu0 0
          %990 = vmatmul.mubr.bf16.gmra.mrb[0].mxu0 %v952
          %v991 = vpop.f32.mrb[0].mxu0
          %v992 = vadd.f32 0.0, %v991
          %v993 = vpop.f32.mrb[0].mxu0
          %v994 = vpop.f32.mrb[0].mxu0
          %v995 = vadd.f32 0.0, %v994
          %v996 = vpop.f32.mrb[0].mxu0
          %997 = vdwg.mxu0
          %v998 = vmul.f32 %v992, 0.35355338
          %v999 = vmul.f32 %v995, 0.35355338
          %v1000 = vsel %vm630, %v998, -inf
          %1001 = vmax.xlane.f32.xlu0 %v1000
          %v1002 = vpop.xlane.xlu0 %1001
          %v1003 = vsel %vm630, %v999, -inf
          %1004 = vmax.xlane.f32.xlu0 %v1003
          %v1005 = vpop.xlane.xlu0 %1004
          %v1006 = vsub.f32 %v998, %v1002
          %v1007 = vsub.f32 %v999, %v1005
          %v1008 = vmul.f32 %v1006, 1.442695
          %v1009 = vpow.pop %v1008
          %v1010 = vmul.f32 %v1007, 1.442695
          %v1011 = vpow.pop %v1010
          %v1012 = vsel %vm630, %v1009, 0.0
          %1013 = vadd.xlane.f32.xlu0 %v1012
          %v1014 = vpop.xlane.xlu0 %1013
          %v1015 = vsel %vm630, %v1011, 0.0
          %1016 = vadd.xlane.f32.xlu0 %v1015
          %v1017 = vpop.xlane.xlu0 %1016
          %v1018 = vrcp.pop %v1014
          %v1019 = vrcp.pop %v1017
          %v1020 = vmul.f32 %v1009, %v1018
          %v1021 = vmul.f32 %v1011, %v1019
          %v1022 = vpack.c.bf16 %v1021, %v1020
          %1023 = vrot.lane.b32.xlu0 %v576, 40
          %v1024 = vpop.permute.xlu0 %1023
          %v1027 = vsel %vm630, %v1022, 0
          %1029 = vmatprep.subr.bf16.mxu0 0
          %1030 = vmatpush1.bf16.msra.mxu0 %v1024
          %1031 = vmatprep.subr.bf16.mxu0 0
          %1032 = vmatpush1.bf16.msra.mxu0 0
          %1033 = vmatprep.subr.bf16.mxu0 0
          %1034 = vmatpush1.bf16.msra.mxu0 0
          %1035 = vmatprep.subr.bf16.mxu0 0
          %1036 = vmatpush1.bf16.msra.mxu0 0
          %1037 = vmatprep.subr.bf16.mxu0 0
          %1038 = vmatpush1.bf16.msra.mxu0 0
          %1039 = vmatprep.subr.bf16.mxu0 0
          %1040 = vmatpush1.bf16.msra.mxu0 0
          %1041 = vmatprep.subr.bf16.mxu0 0
          %1042 = vmatpush1.bf16.msra.mxu0 0
          %1043 = vmatprep.subr.bf16.mxu0 0
          %1044 = vmatpush1.bf16.msra.mxu0 0
          %1045 = vmatprep.subr.bf16.mxu0 0
          %1046 = vmatpush1.bf16.msra.mxu0 0
          %1047 = vmatprep.subr.bf16.mxu0 0
          %1048 = vmatpush1.bf16.msra.mxu0 0
          %1049 = vmatprep.subr.bf16.mxu0 0
          %1050 = vmatpush1.bf16.msra.mxu0 0
          %1051 = vmatprep.subr.bf16.mxu0 0
          %1052 = vmatpush1.bf16.msra.mxu0 0
          %1053 = vmatprep.subr.bf16.mxu0 0
          %1054 = vmatpush1.bf16.msra.mxu0 0
          %1055 = vmatprep.subr.bf16.mxu0 0
          %1056 = vmatpush1.bf16.msra.mxu0 0
          %1057 = vmatprep.subr.bf16.mxu0 0
          %1058 = vmatpush1.bf16.msra.mxu0 0
          %1059 = vmatprep.subr.bf16.mxu0 0
          %1060 = vmatpush1.bf16.msra.mxu0 0
          %1061 = vmatprep.mubr.bf16.mxu0 0
          %1062 = vmatmul.mubr.bf16.gmra.mrb[0].mxu0 %v1027
          %v1063 = vpop.f32.mrb[0].mxu0
          %v1064 = vadd.f32 0.0, %v1063
          %v1065 = vpop.f32.mrb[0].mxu0
          %v1066 = vpop.f32.mrb[0].mxu0
          %v1067 = vadd.f32 0.0, %v1066
          %v1068 = vpop.f32.mrb[0].mxu0
          %1069 = vdwg.mxu0
          %1072 = vrot.lane.b32.xlu0 %v818, 8
          %v1073 = vpop.permute.xlu0 %1072
          %1074 = vrot.lane.b32.xlu0 %v821, 8
          %v1075 = vpop.permute.xlu0 %1074
          %1080 = vrot.lane.b32.xlu0 %v941, 16
          %v1081 = vpop.permute.xlu0 %1080
          %1082 = vrot.lane.b32.xlu0 %v944, 16
          %v1083 = vpop.permute.xlu0 %1082
          %1088 = vrot.lane.b32.xlu0 %v1064, 24
          %v1089 = vpop.permute.xlu0 %1088
          %1090 = vrot.lane.b32.xlu0 %v1067, 24
          %v1091 = vpop.permute.xlu0 %1090
          %v1094 = vsel %vm580, %v695, %v1073
          %v1095 = vsel %vm580, %v698, %v1075
          %v1096 = vsel %vm630, %v1094, %v1081
          %v1097 = vsel %vm630, %v1095, %v1083
          %vm1098 = vcmask 195584
          %v1099 = vsel %vm1098, %v1096, %v1089
          %v1100 = vsel %vm1098, %v1097, %v1091
          %s1101 = smul.addr %s511, 4
          %s1102 = scalar_lea.vmem %s5, %s1101
          %v1103 = vld [vmem:[%s1102] sm:$0xf]
          %v1104 = vld [vmem:[%s1102 + $0x4] sm:$0xf]
          %v1105 = vld [vmem:[%s1102 + $0x8] sm:$0xf]
          %v1106 = vld [vmem:[%s1102 + $0xc] sm:$0xf]
          %v1107 = vpack.c.bf16 %v1100, %v1099
          %s1108 = scalar_lea.vmem %s6, %s504
          %v1109 = vld [vmem:[%s1108] sm:$0x1]
          %v1111 = vlaneseq
          %v1112 = vshrl.u32 %v1111, 7
          %v1113 = vsub.s32 0, %v1112
          %v1114 = vrot.slane %v1109, %v1113
          %v1120 = vunpack.c.l.b16 %v1103
          %v1121 = vunpack.c.l.b16 %v1104
          %v1122 = vunpack.c.l.b16 %v1105
          %v1123 = vunpack.c.l.b16 %v1106
          %v1124 = vpack.c.b16 %v1121, %v1120
          %v1125 = vpack.c.b16 %v1123, %v1122
          %v1129 = vsel %vm531, %v1107, 0
          %1131 = vmatprep.subr.bf16.mxu0 0
          %1132 = vmatpush1.bf16.msra.mxu0 %v1124
          %1133 = vmatprep.subr.bf16.mxu0 0
          %1134 = vmatpush1.bf16.msra.mxu0 %v1125
          %1135 = vmatprep.subr.bf16.mxu0 0
          %1136 = vmatpush1.bf16.msra.mxu0 0
          %1137 = vmatprep.subr.bf16.mxu0 0
          %1138 = vmatpush1.bf16.msra.mxu0 0
          %1139 = vmatprep.subr.bf16.mxu0 0
          %1140 = vmatpush1.bf16.msra.mxu0 0
          %1141 = vmatprep.subr.bf16.mxu0 0
          %1142 = vmatpush1.bf16.msra.mxu0 0
          %1143 = vmatprep.subr.bf16.mxu0 0
          %1144 = vmatpush1.bf16.msra.mxu0 0
          %1145 = vmatprep.subr.bf16.mxu0 0
          %1146 = vmatpush1.bf16.msra.mxu0 0
          %1147 = vmatprep.subr.bf16.mxu0 0
          %1148 = vmatpush1.bf16.msra.mxu0 0
          %1149 = vmatprep.subr.bf16.mxu0 0
          %1150 = vmatpush1.bf16.msra.mxu0 0
          %1151 = vmatprep.subr.bf16.mxu0 0
          %1152 = vmatpush1.bf16.msra.mxu0 0
          %1153 = vmatprep.subr.bf16.mxu0 0
          %1154 = vmatpush1.bf16.msra.mxu0 0
          %1155 = vmatprep.subr.bf16.mxu0 0
          %1156 = vmatpush1.bf16.msra.mxu0 0
          %1157 = vmatprep.subr.bf16.mxu0 0
          %1158 = vmatpush1.bf16.msra.mxu0 0
          %1159 = vmatprep.subr.bf16.mxu0 0
          %1160 = vmatpush1.bf16.msra.mxu0 0
          %1161 = vmatprep.subr.bf16.mxu0 0
          %1162 = vmatpush1.bf16.msra.mxu0 0
          %1163 = vmatprep.mubr.bf16.mxu0 0
          %1164 = vmatmul.mubr.bf16.gmra.mrb[0].mxu0 %v1129
          %v1165 = vpop.f32.mrb[0].mxu0
          %v1166 = vadd.f32 %v1114, %v1165
          %v1167 = vpop.f32.mrb[0].mxu0
          %v1168 = vpop.f32.mrb[0].mxu0
          %v1169 = vadd.f32 %v1114, %v1168
          %v1170 = vpop.f32.mrb[0].mxu0
          %1171 = vdwg.mxu0
          %v1172 = vadd.f32 %v509, %v1166
          %v1173 = vadd.f32 %v510, %v1169
          %s1174 = scalar_lea.vmem %s7, %s504
          %v1175 = vld [vmem:[%s1174] sm:$0x1]
          %s1176 = scalar_lea.vmem %s8, %s504
          %v1177 = vld [vmem:[%s1176] sm:$0x1]
          %v1178 = vsel %vm531, %v1172, 0.0
          %1179 = vadd.xlane.f32.xlu0 %v1178
          %v1180 = vpop.xlane.xlu0 %1179
          %v1181 = vsel %vm531, %v1173, 0.0
          %1182 = vadd.xlane.f32.xlu0 %v1181
          %v1183 = vpop.xlane.xlu0 %1182
          %v1184 = vrcp.pop 32.0
          %v1185 = vmul.f32 %v1180, %v1184
          %v1186 = vmul.f32 %v1183, %v1184
          %v1187 = vsub.f32 %v1172, %v1185
          %v1188 = vsub.f32 %v1173, %v1186
          %v1189 = vmul.f32 %v1187, %v1187
          %v1190 = vmul.f32 %v1188, %v1188
          %v1191 = vsel %vm531, %v1189, 0.0
          %1192 = vadd.xlane.f32.xlu0 %v1191
          %v1193 = vpop.xlane.xlu0 %1192
          %v1194 = vsel %vm531, %v1190, 0.0
          %1195 = vadd.xlane.f32.xlu0 %v1194
          %v1196 = vpop.xlane.xlu0 %1195
          %v1197 = vmul.f32 %v1193, %v1184
          %v1198 = vmul.f32 %v1196, %v1184
          %v1199 = vadd.f32 %v1197, 1e-05
          %v1200 = vadd.f32 %v1198, 1e-05
          %v1201 = vrsqrt.pop %v1199
          %v1202 = vrsqrt.pop %v1200
          %v1203 = vmul.f32 %v1187, %v1201
          %v1204 = vmul.f32 %v1188, %v1202
          %v1206 = vlaneseq
          %v1207 = vshrl.u32 %v1206, 7
          %v1208 = vsub.s32 0, %v1207
          %v1209 = vrot.slane %v1175, %v1208
          %v1211 = vmul.f32 %v1203, %v1209
          %v1212 = vmul.f32 %v1204, %v1209
          %v1214 = vlaneseq
          %v1215 = vshrl.u32 %v1214, 7
          %v1216 = vsub.s32 0, %v1215
          %v1217 = vrot.slane %v1177, %v1216
          %v1219 = vadd.f32 %v1211, %v1217
          %v1220 = vadd.f32 %v1212, %v1217
        $region73: #{vision_transformer_forward.1} parent=67 // loop_footer
          %s508 = sadd.s32 1, %s504
        $region74: #{vision_transformer_forward.1} parent=67 // loop_footer_branch
          %503 = sbr.rel target = $region70
        $region75: #{vision_transformer_forward.1} parent=67 // loop_exit
          _
        %v1221 = vld [vmem:[%s9] sm:$0x1]
        %v1222 = vld [vmem:[%s10] sm:$0x1]
        %vm1223 = vcmask 261120
        %v1224 = vsel %vm1223, %v509, 0.0
        %1225 = vadd.xlane.f32.xlu0 %v1224
        %v1226 = vpop.xlane.xlu0 %1225
        %v1227 = vsel %vm1223, %v510, 0.0
        %1228 = vadd.xlane.f32.xlu0 %v1227
        %v1229 = vpop.xlane.xlu0 %1228
        %v1230 = vrcp.pop 32.0
        %v1231 = vmul.f32 %v1226, %v1230
        %v1232 = vmul.f32 %v1229, %v1230
        %v1233 = vsub.f32 %v509, %v1231
        %v1234 = vsub.f32 %v510, %v1232
        %v1235 = vmul.f32 %v1233, %v1233
        %v1236 = vmul.f32 %v1234, %v1234
        %v1237 = vsel %vm1223, %v1235, 0.0
        %1238 = vadd.xlane.f32.xlu0 %v1237
        %v1239 = vpop.xlane.xlu0 %1238
        %v1240 = vsel %vm1223, %v1236, 0.0
        %1241 = vadd.xlane.f32.xlu0 %v1240
        %v1242 = vpop.xlane.xlu0 %1241
        %v1243 = vmul.f32 %v1239, %v1230
        %v1244 = vmul.f32 %v1242, %v1230
        %v1245 = vadd.f32 %v1243, 1e-05
        %v1246 = vadd.f32 %v1244, 1e-05
        %v1247 = vrsqrt.pop %v1245
        %v1248 = vrsqrt.pop %v1246
        %v1249 = vmul.f32 %v1233, %v1247
        %v1250 = vmul.f32 %v1234, %v1248
        %v1252 = vlaneseq
        %v1253 = vshrl.u32 %v1252, 7
        %v1254 = vsub.s32 0, %v1253
        %v1255 = vrot.slane %v1221, %v1254
        %v1257 = vmul.f32 %v1249, %v1255
        %v1258 = vmul.f32 %v1250, %v1255
        %v1260 = vlaneseq
        %v1261 = vshrl.u32 %v1260, 7
        %v1262 = vsub.s32 0, %v1261
        %v1263 = vrot.slane %v1222, %v1262
        %v1265 = vadd.f32 %v1257, %v1263
        %v1266 = vadd.f32 %v1258, %v1263
        %v1267 = vsel %vm1223, %v1265, 0.0
        %v1268 = vsel %vm1223, %v1266, 0.0
        %v1269 = vadd.f32 %v1267, %v1268
        %v1270 = vrot.slane %v1269, 4
        %v1271 = vadd.f32 %v1269, %v1270
        %v1272 = vrot.slane %v1271, 2
        %v1273 = vadd.f32 %v1271, %v1272
        %v1274 = vrot.slane %v1273, 1
        %v1275 = vadd.f32 %v1273, %v1274
        %v1276 = vrcp.pop 16.0
        %v1277 = vmul.f32 %v1275, %v1276
        %v1278 = vld [vmem:[%s11] sm:$0xf]
        %v1279 = vld [vmem:[%s11 + $0x4] sm:$0xf]
        %v1280 = vld [vmem:[%s11 + $0x8] sm:$0xf]
        %v1281 = vld [vmem:[%s11 + $0xc] sm:$0xf]
        %v1282 = vpack.c.bf16 %v1277, %v1277
        %v1287 = vunpack.c.l.b16 %v1278
        %v1288 = vunpack.c.l.b16 %v1279
        %v1289 = vunpack.c.l.b16 %v1280
        %v1290 = vunpack.c.l.b16 %v1281
        %v1291 = vpack.c.b16 %v1288, %v1287
        %v1292 = vpack.c.b16 %v1290, %v1289
        %v1296 = vsel %vm1223, %v1282, 0
        %1298 = vmatprep.subr.bf16.mxu0 0
        %1299 = vmatpush1.bf16.msra.mxu0 %v1291
        %1300 = vmatprep.subr.bf16.mxu0 0
        %1301 = vmatpush1.bf16.msra.mxu0 %v1292
        %1302 = vmatprep.subr.bf16.mxu0 0
        %1303 = vmatpush1.bf16.msra.mxu0 0
        %1304 = vmatprep.subr.bf16.mxu0 0
        %1305 = vmatpush1.bf16.msra.mxu0 0
        %1306 = vmatprep.subr.bf16.mxu0 0
        %1307 = vmatpush1.bf16.msra.mxu0 0
        %1308 = vmatprep.subr.bf16.mxu0 0
        %1309 = vmatpush1.bf16.msra.mxu0 0
        %1310 = vmatprep.subr.bf16.mxu0 0
        %1311 = vmatpush1.bf16.msra.mxu0 0
        %1312 = vmatprep.subr.bf16.mxu0 0
        %1313 = vmatpush1.bf16.msra.mxu0 0
        %1314 = vmatprep.subr.bf16.mxu0 0
        %1315 = vmatpush1.bf16.msra.mxu0 0
        %1316 = vmatprep.subr.bf16.mxu0 0
        %1317 = vmatpush1.bf16.msra.mxu0 0
        %1318 = vmatprep.subr.bf16.mxu0 0
        %1319 = vmatpush1.bf16.msra.mxu0 0
        %1320 = vmatprep.subr.bf16.mxu0 0
        %1321 = vmatpush1.bf16.msra.mxu0 0
        %1322 = vmatprep.subr.bf16.mxu0 0
        %1323 = vmatpush1.bf16.msra.mxu0 0
        %1324 = vmatprep.subr.bf16.mxu0 0
        %1325 = vmatpush1.bf16.msra.mxu0 0
        %1326 = vmatprep.subr.bf16.mxu0 0
        %1327 = vmatpush1.bf16.msra.mxu0 0
        %1328 = vmatprep.subr.bf16.mxu0 0
        %1329 = vmatpush1.bf16.msra.mxu0 0
        %1330 = vmatprep.mubr.bf16.mxu0 0
        %1331 = vmatmul.mubr.bf16.gmra.mrb[0].mxu0 %v1296
        %v1332 = vpop.f32.mrb[0].mxu0
        %v1333 = vadd.f32 0.0, %v1332
        %v1334 = vpop.f32.mrb[0].mxu0
        %v1335 = vpop.f32.mrb[0].mxu0
        %v1336 = vpop.f32.mrb[0].mxu0
        %1337 = vdwg.mxu0
        %vm1338 = vcmask 57344
        %1339 = vst.msk [vmem:[%s405] sm:$0x1] %vm1338, %v1333
        %s1340 = sand.u32 %s291, 1
        %s1341 = scalar_lea.sflag [#allocation3], %s1340
        %s1342 = sand.u32 %s291, 1
        %s1343 = scalar_lea.vmem [#allocation2], %s1342
        // Predicated region
        $region76: #{vision_transformer_forward.1} parent=67 // pred_check
          %p1344 = pneg %p301
        $region77: #{vision_transformer_forward.1} parent=67 // pred_check_branch
          %1346 = sbr.rel (%p1344) target = $region79
        $region78: #{vision_transformer_forward.1} parent=67 // pred_region
          %s1348 = ssub.s32 16, 16
          %1349 = vsyncadd %s1341, %s1348
          %s1350 = smul.addr %s26, 16
          %s1351 = scalar_lea.hbm %s12, %s1350
          %s1353 = sshll.u32 %s1343, 4
          %s1354 = int_to_ptr.vmem [resolvable:$true] %s1353
          %1356 = dma.vmem_to_hbm [thread:$0]  %s1354, 16, %s1351, %s1341
        $region79: #{vision_transformer_forward.1} parent=67 // pred_fallthru
          _
      $region68: #{vision_transformer_forward.1} parent=5 // pred_fallthru
        _
      %p1357 = scmp.le.s32.totalorder 2, %s21
      // Predicated region
      $region80: #{vision_transformer_forward.1} parent=5 // pred_check
        %p1358 = pneg %p1357
      $region81: #{vision_transformer_forward.1} parent=5 // pred_check_branch
        %1360 = sbr.rel (%p1358) target = $region83
      $region82: #{vision_transformer_forward.1} parent=5 // pred_region
        %s1361 = ssub.s32 %s21, 2
        // Predicated region
        $region84: #{vision_transformer_forward.1} parent=82 // pred_check
          %p1362 = pneg %p307
        $region85: #{vision_transformer_forward.1} parent=82 // pred_check_branch
          %1364 = sbr.rel (%p1362) target = $region87
        $region86: #{vision_transformer_forward.1} parent=82 // pred_region
          %s1365 = sand.u32 %s292, 1
          %s1366 = scalar_lea.sflag [#allocation3], %s1365
          %s1367 = sand.u32 %s292, 1
          %s1368 = scalar_lea.vmem [#allocation2], %s1367
          %1369 = dma.done %s1366, 16
        $region87: #{vision_transformer_forward.1} parent=82 // pred_fallthru
          _
      $region83: #{vision_transformer_forward.1} parent=5 // pred_fallthru
        _
    $region6: #{vision_transformer_forward.1} parent=1 // loop_footer
      %s25 = sadd.s32 1, %s21
    $region7: #{vision_transformer_forward.1} parent=1 // loop_footer_branch
      %20 = sbr.rel target = $region3
    $region8: #{vision_transformer_forward.1} parent=1 // loop_exit
      _
    %1370 = vsyncpa [#allocation3], 1
    %s1371 = scalar_lea.sflag [#allocation3], 1
    %1372 = vsyncpa %s1371, 1

</llo_original>
